<compile_context>
chip_gen: v5e
topology: v5e:2x2
jax: 0.10.0
libtpu: 0.0.40
codegen_flags: <defaults>
</compile_context>

<pallas_src>
import math
from functools import partial

import jax
import jax.numpy as jnp
from jax.experimental import pallas as pl
from jax.experimental.pallas import tpu as pltpu

EPS = 1e-5  # PyTorch nn.LayerNorm default eps


# ----------------------------- in-kernel helpers -----------------------------
def _layernorm(x, g, b):
    # x: (R, E) f32, g/b: (1, E). Biased variance, eps inside rsqrt (PyTorch semantics).
    mu = jnp.mean(x, axis=-1, keepdims=True)
    xc = x - mu
    var = jnp.mean(xc * xc, axis=-1, keepdims=True)
    return xc * jax.lax.rsqrt(var + EPS) * g + b


def _gelu(x):
    # TODO(synk): PyTorch nn.GELU() default is the exact erf-based GELU; we use the
    # tanh approximation (guaranteed Mosaic lowering, ~1e-3 difference).
    return 0.5 * x * (1.0 + jnp.tanh(0.7978845608028654 * (x + 0.044715 * x * x * x)))


def _bf16(x):
    return x.astype(jnp.bfloat16)


# ----------------------------- fused ViT kernel -----------------------------
def _vit_kernel(
    # inputs
    xp_ref, w_emb_ref, b_emb_ref, cls_ref, pos_ref,
    ln_ref, w_in_ref, b_in_ref, w_out_ref, b_out_ref,
    w1_ref, b1_ref, w2_ref, b2_ref,
    hn_g_ref, hn_b_ref, hw1_ref, hb1_ref, hw2_ref, hb2_ref,
    # output
    o_ref,
    # scratch: residual stream, resident in VMEM across the layer grid axis
    x_vmem,
    *, num_heads,
):
    l = pl.program_id(1)
    S, E = x_vmem.shape
    n = S - 1
    hd = E // num_heads
    scale = 1.0 / math.sqrt(hd)

    # ----- layer 0: patch embedding + class token (appended last) + pos. enc -----
    @pl.when(l == 0)
    def _embed():
        xp = _bf16(xp_ref[0])                                       # (n, patch_dim)
        emb = jnp.dot(xp, w_emb_ref[...],
                      preferred_element_type=jnp.float32) + b_emb_ref[...]
        x_vmem[0:n, :] = emb + pos_ref[0:n, :]
        x_vmem[n:S, :] = cls_ref[...] + pos_ref[n:S, :]
        # dropout_layer -> identity at inference

    x = x_vmem[...]                                                 # (S, E) f32

    # ----- encoder layer `l` -----
    ln = ln_ref[0]                                                  # (4, E): ln1_g, ln1_b, ln2_g, ln2_b
    h = _layernorm(x, ln[0:1], ln[1:2])

    # fused QKV projection: one fat (S,E) @ (E,3E) matmul
    qkv = jnp.dot(_bf16(h), w_in_ref[0],
                  preferred_element_type=jnp.float32) + b_in_ref[0]  # (S, 3E) f32

    # head-batched attention: stack per-head lane slices -> (H, S, hd), then
    # single batched dot_generals (flash-attention style einsums).
    q = _bf16(jnp.stack([qkv[:, i * hd:(i + 1) * hd] for i in range(num_heads)]))
    k = _bf16(jnp.stack([qkv[:, E + i * hd:E + (i + 1) * hd] for i in range(num_heads)]))
    v = _bf16(jnp.stack([qkv[:, 2 * E + i * hd:2 * E + (i + 1) * hd] for i in range(num_heads)]))

    s = jnp.einsum("hqd,hkd->hqk", q, k,
                   preferred_element_type=jnp.float32) * scale       # (H, S, S) f32
    s = s - jnp.max(s, axis=-1, keepdims=True)
    p = jnp.exp(s)
    p = p * pl.reciprocal(jnp.sum(p, axis=-1, keepdims=True), approx=True)

    ctx = jnp.einsum("hqk,hkd->hqd", _bf16(p), v,
                     preferred_element_type=jnp.float32)             # (H, S, hd)

    # out-projection with the head-concat folded in:
    # concat_h(ctx_h) @ W_out  ==  sum_h ctx_h @ W_out[h]   (W_out pre-split per head)
    attn = jnp.einsum("hqd,hde->hqe", _bf16(ctx), w_out_ref[0],
                      preferred_element_type=jnp.float32)            # (H, S, E)
    attn = jnp.sum(attn, axis=0) + b_out_ref[0]                      # (S, E)

    x1 = h + attn                                   # residual on normalized x (matches reference)

    h2 = _layernorm(x1, ln[2:3], ln[3:4])
    m = jnp.dot(_bf16(h2), w1_ref[0], preferred_element_type=jnp.float32) + b1_ref[0]
    m = _gelu(m)
    m = jnp.dot(_bf16(m), w2_ref[0], preferred_element_type=jnp.float32) + b2_ref[0]
    x_out = x1 + m
    x_vmem[...] = x_out

    # ----- last layer: final norm + classifier + log_softmax on the class token -----
    @pl.when(l == pl.num_programs(1) - 1)
    def _head():
        cls_tok = x_out[n:S, :]                                      # class token is LAST position
        hh = _layernorm(cls_tok, hn_g_ref[...], hn_b_ref[...])
        z = jnp.dot(_bf16(hh), hw1_ref[...],
                    preferred_element_type=jnp.float32) + hb1_ref[...]
        z = _gelu(z)
        logits = jnp.dot(_bf16(z), hw2_ref[...],
                         preferred_element_type=jnp.float32) + hb2_ref[...]
        logits = logits - jnp.max(logits, axis=-1, keepdims=True)
        lse = jnp.log(jnp.sum(jnp.exp(logits), axis=-1, keepdims=True))
        o_ref[0] = (logits - lse).astype(o_ref.dtype)                # log_softmax


# ----------------------------- wrapper -----------------------------
def vit_forward(x, params, *, patch, num_heads):
    B, C, H, W = x.shape
    n = (H // patch) * (W // patch)
    pd = C * patch * patch
    S = n + 1
    E = params["pos_enc"].shape[-1]
    L = params["w_in"].shape[0]
    classes = params["hw2"].shape[-1]

    # raw reshape, exactly as the PyTorch module does
    xp = x.reshape(B, n, pd)

    def layer_spec(shape):  # per-layer stacked params: select layer `l`
        return pl.BlockSpec((1,) + shape[1:],
                            lambda b, l, _r=len(shape) - 1: (l,) + (0,) * _r)

    def const_spec(shape):  # shared params: whole array, constant block
        return pl.BlockSpec(shape, lambda b, l, _r=len(shape): (0,) * _r)

    in_specs = [
        pl.BlockSpec((1, n, pd), lambda b, l: (b, 0, 0)),   # patches for batch b
        const_spec(params["w_embed"].shape),
        const_spec(params["b_embed"].shape),
        const_spec(params["class_token"].shape),
        const_spec(params["pos_enc"].shape),
        layer_spec(params["ln"].shape),
        layer_spec(params["w_in"].shape),
        layer_spec(params["b_in"].shape),
        layer_spec(params["w_out_h"].shape),
        layer_spec(params["b_out"].shape),
        layer_spec(params["w1"].shape),
        layer_spec(params["b1"].shape),
        layer_spec(params["w2"].shape),
        layer_spec(params["b2"].shape),
        const_spec(params["hn_g"].shape),
        const_spec(params["hn_b"].shape),
        const_spec(params["hw1"].shape),
        const_spec(params["hb1"].shape),
        const_spec(params["hw2"].shape),
        const_spec(params["hb2"].shape),
    ]

    out = pl.pallas_call(
        partial(_vit_kernel, num_heads=num_heads),
        out_shape=jax.ShapeDtypeStruct((B, 1, classes), jnp.float32),
        grid=(B, L),                                  # batch parallel, layers sequential
        in_specs=in_specs,
        out_specs=pl.BlockSpec((1, 1, classes), lambda b, l: (b, 0, 0)),
        scratch_shapes=[pltpu.VMEM((S, E), jnp.float32)],   # resident residual stream
        compiler_params=pltpu.CompilerParams(
            dimension_semantics=("parallel", "arbitrary"),
            vmem_limit_bytes=32 * 1024 * 1024,        # explicit; safe on v5e/v6e/v7x
        ),
    )(
        xp,
        params["w_embed"], params["b_embed"], params["class_token"], params["pos_enc"],
        params["ln"], params["w_in"], params["b_in"], params["w_out_h"], params["b_out"],
        params["w1"], params["b1"], params["w2"], params["b2"],
        params["hn_g"], params["hn_b"], params["hw1"], params["hb1"], params["hw2"], params["hb2"],
    )
    return out[:, 0, :]


# ----------------------------- parameter init -----------------------------
def init_params(key, *, patch_dim, embed, num_layers, num_heads, mlp_size, classes, num_patches):
    E, L = embed, num_layers
    hd = E // num_heads

    def nrm(k, shape, scale=0.02):
        return scale * jax.random.normal(k, shape, jnp.float32)

    ks = iter(jax.random.split(key, 12))
    p = {}
    # patch embedding (weights pre-transposed to (in, out); matmul weights in bf16)
    p["w_embed"] = nrm(next(ks), (patch_dim, E)).astype(jnp.bfloat16)
    p["b_embed"] = jnp.zeros((1, E), jnp.float32)
    p["class_token"] = jax.random.normal(next(ks), (1, E), jnp.float32)
    p["pos_enc"] = jax.random.normal(next(ks), (num_patches + 1, E), jnp.float32)

    # encoder stack, stacked over the layer axis
    ln_one = jnp.stack([jnp.ones((E,)), jnp.zeros((E,)), jnp.ones((E,)), jnp.zeros((E,))])
    p["ln"] = jnp.tile(ln_one[None], (L, 1, 1)).astype(jnp.float32)       # (L,4,E)
    p["w_in"] = nrm(next(ks), (L, E, 3 * E)).astype(jnp.bfloat16)         # in_proj (q|k|v), transposed
    p["b_in"] = jnp.zeros((L, 1, 3 * E), jnp.float32)
    # out_proj (transposed, (E,E)) pre-split by head into (H, hd, E)
    p["w_out_h"] = nrm(next(ks), (L, num_heads, hd, E)).astype(jnp.bfloat16)
    p["b_out"] = jnp.zeros((L, 1, E), jnp.float32)
    p["w1"] = nrm(next(ks), (L, E, 4 * E)).astype(jnp.bfloat16)           # mlp fc1
    p["b1"] = jnp.zeros((L, 1, 4 * E), jnp.float32)
    p["w2"] = nrm(next(ks), (L, 4 * E, E)).astype(jnp.bfloat16)           # mlp fc2
    p["b2"] = jnp.zeros((L, 1, E), jnp.float32)

    # classifier head
    p["hn_g"] = jnp.ones((1, E), jnp.float32)
    p["hn_b"] = jnp.zeros((1, E), jnp.float32)
    p["hw1"] = nrm(next(ks), (E, mlp_size)).astype(jnp.bfloat16)
    p["hb1"] = jnp.zeros((1, mlp_size), jnp.float32)
    p["hw2"] = nrm(next(ks), (mlp_size, classes)).astype(jnp.bfloat16)
    p["hb2"] = jnp.zeros((1, classes), jnp.float32)
    return p


if __name__ == "__main__":
    B, C, H, W = 2, 4, 16, 16
    patch = 4
    embed = 32
    num_heads = 4
    num_layers = 2
    mlp_size = 64
    classes = 10
    num_patches = (H // patch) * (W // patch)

    key = jax.random.PRNGKey(0)
    kx, kp = jax.random.split(key)
    x = jax.random.normal(kx, (B, C, H, W), jnp.float32)
    params = init_params(
        kp,
        patch_dim=C * patch * patch,
        embed=embed,
        num_layers=num_layers,
        num_heads=num_heads,
        mlp_size=mlp_size,
        classes=classes,
        num_patches=num_patches,
    )

    out = vit_forward(x, params, patch=patch, num_heads=num_heads)
    out = jax.block_until_ready(out)
    assert out.shape == (B, classes), out.shape
    assert bool(jnp.all(jnp.isfinite(out)))
    print("KERNEL_OK")
</pallas_src>

<mosaic_0001>
module attributes {stable_mosaic.version = 11 : i64} {
  func.func @_vit_kernel(%arg0: i32, %arg1: i32, %arg2: memref<1x16x64xf32, #tpu.memory_space<vmem>>, %arg3: memref<64x32xbf16, #tpu.memory_space<vmem>>, %arg4: memref<1x32xf32, #tpu.memory_space<vmem>>, %arg5: memref<1x32xf32, #tpu.memory_space<vmem>>, %arg6: memref<17x32xf32, #tpu.memory_space<vmem>>, %arg7: memref<1x4x32xf32, #tpu.memory_space<vmem>>, %arg8: memref<1x32x96xbf16, #tpu.memory_space<vmem>>, %arg9: memref<1x1x96xf32, #tpu.memory_space<vmem>>, %arg10: memref<1x4x8x32xbf16, #tpu.memory_space<vmem>>, %arg11: memref<1x1x32xf32, #tpu.memory_space<vmem>>, %arg12: memref<1x32x128xbf16, #tpu.memory_space<vmem>>, %arg13: memref<1x1x128xf32, #tpu.memory_space<vmem>>, %arg14: memref<1x128x32xbf16, #tpu.memory_space<vmem>>, %arg15: memref<1x1x32xf32, #tpu.memory_space<vmem>>, %arg16: memref<1x32xf32, #tpu.memory_space<vmem>>, %arg17: memref<1x32xf32, #tpu.memory_space<vmem>>, %arg18: memref<32x64xbf16, #tpu.memory_space<vmem>>, %arg19: memref<1x64xf32, #tpu.memory_space<vmem>>, %arg20: memref<64x10xbf16, #tpu.memory_space<vmem>>, %arg21: memref<1x10xf32, #tpu.memory_space<vmem>>, %arg22: memref<1x1x10xf32, #tpu.memory_space<vmem>>, %arg23: memref<17x32xf32, #tpu.memory_space<vmem>>) attributes {dimension_semantics = [#tpu.dimension_semantics<parallel>, #tpu.dimension_semantics<arbitrary>], iteration_bounds = array<i64: 2, 2>, scalar_prefetch = 0 : i64, scratch_operands = 1 : i64, tpu.core_type = #tpu.core_type<tc>, window_params = [{transform_indices = @transform_0, window_bounds = array<i64: 1, 16, 64>}, {pipeline_mode = #tpu.pipeline_mode<synchronous>, transform_indices = @transform_1, window_bounds = array<i64: 64, 32>}, {pipeline_mode = #tpu.pipeline_mode<synchronous>, transform_indices = @transform_2, window_bounds = array<i64: 1, 32>}, {pipeline_mode = #tpu.pipeline_mode<synchronous>, transform_indices = @transform_3, window_bounds = array<i64: 1, 32>}, {pipeline_mode = #tpu.pipeline_mode<synchronous>, transform_indices = @transform_4, window_bounds = array<i64: 17, 32>}, {transform_indices = @transform_5, window_bounds = array<i64: 1, 4, 32>}, {transform_indices = @transform_6, window_bounds = array<i64: 1, 32, 96>}, {transform_indices = @transform_7, window_bounds = array<i64: 1, 1, 96>}, {transform_indices = @transform_8, window_bounds = array<i64: 1, 4, 8, 32>}, {transform_indices = @transform_9, window_bounds = array<i64: 1, 1, 32>}, {transform_indices = @transform_10, window_bounds = array<i64: 1, 32, 128>}, {transform_indices = @transform_11, window_bounds = array<i64: 1, 1, 128>}, {transform_indices = @transform_12, window_bounds = array<i64: 1, 128, 32>}, {transform_indices = @transform_13, window_bounds = array<i64: 1, 1, 32>}, {pipeline_mode = #tpu.pipeline_mode<synchronous>, transform_indices = @transform_14, window_bounds = array<i64: 1, 32>}, {pipeline_mode = #tpu.pipeline_mode<synchronous>, transform_indices = @transform_15, window_bounds = array<i64: 1, 32>}, {pipeline_mode = #tpu.pipeline_mode<synchronous>, transform_indices = @transform_16, window_bounds = array<i64: 32, 64>}, {pipeline_mode = #tpu.pipeline_mode<synchronous>, transform_indices = @transform_17, window_bounds = array<i64: 1, 64>}, {pipeline_mode = #tpu.pipeline_mode<synchronous>, transform_indices = @transform_18, window_bounds = array<i64: 64, 10>}, {pipeline_mode = #tpu.pipeline_mode<synchronous>, transform_indices = @transform_19, window_bounds = array<i64: 1, 10>}, {transform_indices = @transform_20, window_bounds = array<i64: 1, 1, 10>}]} {
    %c0_i32 = arith.constant 0 : i32
    %0 = arith.cmpi eq, %arg1, %c0_i32 : i32
    %1 = arith.extui %0 : i1 to i32
    %c0_i32_0 = arith.constant 0 : i32
    %2 = arith.cmpi ne, %1, %c0_i32_0 : i32
    scf.if %2 {
      %c0_56 = arith.constant 0 : index
      %c0_57 = arith.constant 0 : index
      %c0_58 = arith.constant 0 : index
      %147 = vector.load %arg2[%c0_56, %c0_57, %c0_58] : memref<1x16x64xf32, #tpu.memory_space<vmem>>, vector<1x16x64xf32>
      %148 = vector.shape_cast %147 : vector<1x16x64xf32> to vector<16x64xf32>
      %149 = arith.truncf %148 : vector<16x64xf32> to vector<16x64xbf16>
      %c0_59 = arith.constant 0 : index
      %c0_60 = arith.constant 0 : index
      %150 = vector.load %arg3[%c0_59, %c0_60] : memref<64x32xbf16, #tpu.memory_space<vmem>>, vector<64x32xbf16>
      %cst_61 = arith.constant dense<0.000000e+00> : vector<16x32xf32>
      %151 = tpu.matmul %149, %150, %cst_61 {dimension_numbers = #tpu.dot_dimension_numbers<[1], [0], [0], [1], [0, 0, 1, 1], [], []>} : vector<16x64xbf16>, vector<64x32xbf16>, vector<16x32xf32> -> vector<16x32xf32>
      %c0_62 = arith.constant 0 : index
      %c0_63 = arith.constant 0 : index
      %152 = vector.load %arg4[%c0_62, %c0_63] : memref<1x32xf32, #tpu.memory_space<vmem>>, vector<1x32xf32>
      %153 = vector.broadcast %152 : vector<1x32xf32> to vector<16x32xf32>
      %154 = arith.addf %151, %153 : vector<16x32xf32>
      %c0_64 = arith.constant 0 : index
      %c0_65 = arith.constant 0 : index
      %155 = vector.load %arg6[%c0_64, %c0_65] : memref<17x32xf32, #tpu.memory_space<vmem>>, vector<16x32xf32>
      %156 = arith.addf %154, %155 : vector<16x32xf32>
      %c0_66 = arith.constant 0 : index
      %c0_67 = arith.constant 0 : index
      %157 = vector.load %arg23[%c0_66, %c0_67] : memref<17x32xf32, #tpu.memory_space<vmem>>, vector<16x32xf32>
      tpu.vector_store %arg23[%c0_66, %c0_67], %156 {strides = array<i32>} : memref<17x32xf32, #tpu.memory_space<vmem>>, vector<16x32xf32>,
      %c0_68 = arith.constant 0 : index
      %c0_69 = arith.constant 0 : index
      %158 = vector.load %arg5[%c0_68, %c0_69] : memref<1x32xf32, #tpu.memory_space<vmem>>, vector<1x32xf32>
      %c16 = arith.constant 16 : index
      %c0_70 = arith.constant 0 : index
      %159 = vector.load %arg6[%c16, %c0_70] : memref<17x32xf32, #tpu.memory_space<vmem>>, vector<1x32xf32>
      %160 = arith.addf %158, %159 : vector<1x32xf32>
      %c16_71 = arith.constant 16 : index
      %c0_72 = arith.constant 0 : index
      %161 = vector.load %arg23[%c16_71, %c0_72] : memref<17x32xf32, #tpu.memory_space<vmem>>, vector<1x32xf32>
      tpu.vector_store %arg23[%c16_71, %c0_72], %160 {strides = array<i32>} : memref<17x32xf32, #tpu.memory_space<vmem>>, vector<1x32xf32>,
    } else {
    }
    %c0 = arith.constant 0 : index
    %c0_1 = arith.constant 0 : index
    %3 = vector.load %arg23[%c0, %c0_1] : memref<17x32xf32, #tpu.memory_space<vmem>>, vector<17x32xf32>
    %c0_2 = arith.constant 0 : index
    %c0_3 = arith.constant 0 : index
    %c0_4 = arith.constant 0 : index
    %4 = vector.load %arg7[%c0_2, %c0_3, %c0_4] : memref<1x4x32xf32, #tpu.memory_space<vmem>>, vector<1x4x32xf32>
    %5 = vector.shape_cast %4 : vector<1x4x32xf32> to vector<4x32xf32>
    %6 = vector.extract_strided_slice %5 {offsets = [0, 0], sizes = [1, 32], strides = [1, 1]} : vector<4x32xf32> to vector<1x32xf32>
    %7 = vector.extract_strided_slice %5 {offsets = [1, 0], sizes = [1, 32], strides = [1, 1]} : vector<4x32xf32> to vector<1x32xf32>
    %cst = arith.constant dense<0.000000e+00> : vector<17xf32>
    %8 = vector.multi_reduction <add>, %3, %cst [1] : vector<17x32xf32> to vector<17xf32>
    %9 = vector.shape_cast %8 : vector<17xf32> to vector<17x1xf32>
    %cst_5 = arith.constant 3.200000e+01 : f32
    %10 = vector.broadcast %cst_5 : f32 to vector<17x1xf32>
    %11 = arith.divf %9, %10 : vector<17x1xf32>
    %12 = vector.broadcast %11 : vector<17x1xf32> to vector<17x32xf32>
    %13 = arith.subf %3, %12 : vector<17x32xf32>
    %14 = arith.mulf %13, %13 : vector<17x32xf32>
    %cst_6 = arith.constant dense<0.000000e+00> : vector<17xf32>
    %15 = vector.multi_reduction <add>, %14, %cst_6 [1] : vector<17x32xf32> to vector<17xf32>
    %16 = vector.shape_cast %15 : vector<17xf32> to vector<17x1xf32>
    %cst_7 = arith.constant 3.200000e+01 : f32
    %17 = vector.broadcast %cst_7 : f32 to vector<17x1xf32>
    %18 = arith.divf %16, %17 : vector<17x1xf32>
    %cst_8 = arith.constant 9.99999974E-6 : f32
    %19 = vector.broadcast %cst_8 : f32 to vector<17x1xf32>
    %20 = arith.addf %18, %19 : vector<17x1xf32>
    %21 = math.rsqrt %20 : vector<17x1xf32>
    %22 = vector.broadcast %21 : vector<17x1xf32> to vector<17x32xf32>
    %23 = arith.mulf %13, %22 : vector<17x32xf32>
    %24 = vector.broadcast %6 : vector<1x32xf32> to vector<17x32xf32>
    %25 = arith.mulf %23, %24 : vector<17x32xf32>
    %26 = vector.broadcast %7 : vector<1x32xf32> to vector<17x32xf32>
    %27 = arith.addf %25, %26 : vector<17x32xf32>
    %28 = arith.truncf %27 : vector<17x32xf32> to vector<17x32xbf16>
    %c0_9 = arith.constant 0 : index
    %c0_10 = arith.constant 0 : index
    %c0_11 = arith.constant 0 : index
    %29 = vector.load %arg8[%c0_9, %c0_10, %c0_11] : memref<1x32x96xbf16, #tpu.memory_space<vmem>>, vector<1x32x96xbf16>
    %30 = vector.shape_cast %29 : vector<1x32x96xbf16> to vector<32x96xbf16>
    %cst_12 = arith.constant dense<0.000000e+00> : vector<17x96xf32>
    %31 = tpu.matmul %28, %30, %cst_12 {dimension_numbers = #tpu.dot_dimension_numbers<[1], [0], [0], [1], [0, 0, 1, 1], [], []>} : vector<17x32xbf16>, vector<32x96xbf16>, vector<17x96xf32> -> vector<17x96xf32>
    %c0_13 = arith.constant 0 : index
    %c0_14 = arith.constant 0 : index
    %c0_15 = arith.constant 0 : index
    %32 = vector.load %arg9[%c0_13, %c0_14, %c0_15] : memref<1x1x96xf32, #tpu.memory_space<vmem>>, vector<1x1x96xf32>
    %33 = vector.shape_cast %32 : vector<1x1x96xf32> to vector<1x96xf32>
    %34 = vector.broadcast %33 : vector<1x96xf32> to vector<17x96xf32>
    %35 = arith.addf %31, %34 : vector<17x96xf32>
    %36 = vector.extract_strided_slice %35 {offsets = [0, 0], sizes = [17, 8], strides = [1, 1]} : vector<17x96xf32> to vector<17x8xf32>
    %37 = vector.extract_strided_slice %35 {offsets = [0, 8], sizes = [17, 8], strides = [1, 1]} : vector<17x96xf32> to vector<17x8xf32>
    %38 = vector.extract_strided_slice %35 {offsets = [0, 16], sizes = [17, 8], strides = [1, 1]} : vector<17x96xf32> to vector<17x8xf32>
    %39 = vector.extract_strided_slice %35 {offsets = [0, 24], sizes = [17, 8], strides = [1, 1]} : vector<17x96xf32> to vector<17x8xf32>
    %40 = vector.shape_cast %36 : vector<17x8xf32> to vector<1x17x8xf32>
    %41 = vector.shape_cast %37 : vector<17x8xf32> to vector<1x17x8xf32>
    %42 = vector.shape_cast %38 : vector<17x8xf32> to vector<1x17x8xf32>
    %43 = vector.shape_cast %39 : vector<17x8xf32> to vector<1x17x8xf32>
    %44 = tpu.concatenate %40, %41, %42, %43 in 0 : vector<1x17x8xf32>, vector<1x17x8xf32>, vector<1x17x8xf32>, vector<1x17x8xf32> -> vector<4x17x8xf32>
    %45 = arith.truncf %44 : vector<4x17x8xf32> to vector<4x17x8xbf16>
    %46 = vector.extract_strided_slice %35 {offsets = [0, 32], sizes = [17, 8], strides = [1, 1]} : vector<17x96xf32> to vector<17x8xf32>
    %47 = vector.extract_strided_slice %35 {offsets = [0, 40], sizes = [17, 8], strides = [1, 1]} : vector<17x96xf32> to vector<17x8xf32>
    %48 = vector.extract_strided_slice %35 {offsets = [0, 48], sizes = [17, 8], strides = [1, 1]} : vector<17x96xf32> to vector<17x8xf32>
    %49 = vector.extract_strided_slice %35 {offsets = [0, 56], sizes = [17, 8], strides = [1, 1]} : vector<17x96xf32> to vector<17x8xf32>
    %50 = vector.shape_cast %46 : vector<17x8xf32> to vector<1x17x8xf32>
    %51 = vector.shape_cast %47 : vector<17x8xf32> to vector<1x17x8xf32>
    %52 = vector.shape_cast %48 : vector<17x8xf32> to vector<1x17x8xf32>
    %53 = vector.shape_cast %49 : vector<17x8xf32> to vector<1x17x8xf32>
    %54 = tpu.concatenate %50, %51, %52, %53 in 0 : vector<1x17x8xf32>, vector<1x17x8xf32>, vector<1x17x8xf32>, vector<1x17x8xf32> -> vector<4x17x8xf32>
    %55 = arith.truncf %54 : vector<4x17x8xf32> to vector<4x17x8xbf16>
    %56 = vector.extract_strided_slice %35 {offsets = [0, 64], sizes = [17, 8], strides = [1, 1]} : vector<17x96xf32> to vector<17x8xf32>
    %57 = vector.extract_strided_slice %35 {offsets = [0, 72], sizes = [17, 8], strides = [1, 1]} : vector<17x96xf32> to vector<17x8xf32>
    %58 = vector.extract_strided_slice %35 {offsets = [0, 80], sizes = [17, 8], strides = [1, 1]} : vector<17x96xf32> to vector<17x8xf32>
    %59 = vector.extract_strided_slice %35 {offsets = [0, 88], sizes = [17, 8], strides = [1, 1]} : vector<17x96xf32> to vector<17x8xf32>
    %60 = vector.shape_cast %56 : vector<17x8xf32> to vector<1x17x8xf32>
    %61 = vector.shape_cast %57 : vector<17x8xf32> to vector<1x17x8xf32>
    %62 = vector.shape_cast %58 : vector<17x8xf32> to vector<1x17x8xf32>
    %63 = vector.shape_cast %59 : vector<17x8xf32> to vector<1x17x8xf32>
    %64 = tpu.concatenate %60, %61, %62, %63 in 0 : vector<1x17x8xf32>, vector<1x17x8xf32>, vector<1x17x8xf32>, vector<1x17x8xf32> -> vector<4x17x8xf32>
    %65 = arith.truncf %64 : vector<4x17x8xf32> to vector<4x17x8xbf16>
    "tpu.trace_start"() <{level = 10 : i32, message = "hqd,hkd->hqk"}> : () -> ()
    %cst_16 = arith.constant dense<0.000000e+00> : vector<4x17x17xf32>
    %66 = tpu.matmul %45, %55, %cst_16 {dimension_numbers = #tpu.dot_dimension_numbers<[2], [2], [1], [1], [0, 0, 0, 1, 1, 1], [0], [0]>} : vector<4x17x8xbf16>, vector<4x17x8xbf16>, vector<4x17x17xf32> -> vector<4x17x17xf32>
    "tpu.trace_stop"() : () -> ()
    %cst_17 = arith.constant 0.353553385 : f32
    %67 = vector.broadcast %cst_17 : f32 to vector<4x17x17xf32>
    %68 = arith.mulf %66, %67 : vector<4x17x17xf32>
    %cst_18 = arith.constant dense<0xFF800000> : vector<4x17xf32>
    %69 = vector.multi_reduction <maximumf>, %68, %cst_18 [2] : vector<4x17x17xf32> to vector<4x17xf32>
    %70 = vector.shape_cast %69 : vector<4x17xf32> to vector<4x17x1xf32>
    %71 = vector.broadcast %70 : vector<4x17x1xf32> to vector<4x17x17xf32>
    %72 = arith.subf %68, %71 : vector<4x17x17xf32>
    %73 = math.exp %72 : vector<4x17x17xf32>
    %cst_19 = arith.constant dense<0.000000e+00> : vector<4x17xf32>
    %74 = vector.multi_reduction <add>, %73, %cst_19 [2] : vector<4x17x17xf32> to vector<4x17xf32>
    %75 = vector.shape_cast %74 : vector<4x17xf32> to vector<4x17x1xf32>
    %76 = tpu.reciprocal %75 {approx = true} : vector<4x17x1xf32> -> vector<4x17x1xf32>
    %77 = vector.broadcast %76 : vector<4x17x1xf32> to vector<4x17x17xf32>
    %78 = arith.mulf %73, %77 : vector<4x17x17xf32>
    %79 = arith.truncf %78 : vector<4x17x17xf32> to vector<4x17x17xbf16>
    "tpu.trace_start"() <{level = 10 : i32, message = "hqk,hkd->hqd"}> : () -> ()
    %cst_20 = arith.constant dense<0.000000e+00> : vector<4x17x8xf32>
    %80 = tpu.matmul %79, %65, %cst_20 {dimension_numbers = #tpu.dot_dimension_numbers<[2], [1], [1], [2], [0, 0, 0, 1, 1, 2], [0], [0]>} : vector<4x17x17xbf16>, vector<4x17x8xbf16>, vector<4x17x8xf32> -> vector<4x17x8xf32>
    "tpu.trace_stop"() : () -> ()
    %81 = arith.truncf %80 : vector<4x17x8xf32> to vector<4x17x8xbf16>
    %c0_21 = arith.constant 0 : index
    %c0_22 = arith.constant 0 : index
    %c0_23 = arith.constant 0 : index
    %c0_24 = arith.constant 0 : index
    %82 = vector.load %arg10[%c0_21, %c0_22, %c0_23, %c0_24] : memref<1x4x8x32xbf16, #tpu.memory_space<vmem>>, vector<1x4x8x32xbf16>
    %83 = vector.shape_cast %82 : vector<1x4x8x32xbf16> to vector<4x8x32xbf16>
    "tpu.trace_start"() <{level = 10 : i32, message = "hqd,hde->hqe"}> : () -> ()
    %cst_25 = arith.constant dense<0.000000e+00> : vector<4x17x32xf32>
    %84 = tpu.matmul %81, %83, %cst_25 {dimension_numbers = #tpu.dot_dimension_numbers<[2], [1], [1], [2], [0, 0, 0, 1, 1, 2], [0], [0]>} : vector<4x17x8xbf16>, vector<4x8x32xbf16>, vector<4x17x32xf32> -> vector<4x17x32xf32>
    "tpu.trace_stop"() : () -> ()
    %cst_26 = arith.constant dense<0.000000e+00> : vector<17x32xf32>
    %85 = vector.multi_reduction <add>, %84, %cst_26 [0] : vector<4x17x32xf32> to vector<17x32xf32>
    %c0_27 = arith.constant 0 : index
    %c0_28 = arith.constant 0 : index
    %c0_29 = arith.constant 0 : index
    %86 = vector.load %arg11[%c0_27, %c0_28, %c0_29] : memref<1x1x32xf32, #tpu.memory_space<vmem>>, vector<1x1x32xf32>
    %87 = vector.shape_cast %86 : vector<1x1x32xf32> to vector<1x32xf32>
    %88 = vector.broadcast %87 : vector<1x32xf32> to vector<17x32xf32>
    %89 = arith.addf %85, %88 : vector<17x32xf32>
    %90 = arith.addf %27, %89 : vector<17x32xf32>
    %91 = vector.extract_strided_slice %5 {offsets = [2, 0], sizes = [1, 32], strides = [1, 1]} : vector<4x32xf32> to vector<1x32xf32>
    %92 = vector.extract_strided_slice %5 {offsets = [3, 0], sizes = [1, 32], strides = [1, 1]} : vector<4x32xf32> to vector<1x32xf32>
    %cst_30 = arith.constant dense<0.000000e+00> : vector<17xf32>
    %93 = vector.multi_reduction <add>, %90, %cst_30 [1] : vector<17x32xf32> to vector<17xf32>
    %94 = vector.shape_cast %93 : vector<17xf32> to vector<17x1xf32>
    %cst_31 = arith.constant 3.200000e+01 : f32
    %95 = vector.broadcast %cst_31 : f32 to vector<17x1xf32>
    %96 = arith.divf %94, %95 : vector<17x1xf32>
    %97 = vector.broadcast %96 : vector<17x1xf32> to vector<17x32xf32>
    %98 = arith.subf %90, %97 : vector<17x32xf32>
    %99 = arith.mulf %98, %98 : vector<17x32xf32>
    %cst_32 = arith.constant dense<0.000000e+00> : vector<17xf32>
    %100 = vector.multi_reduction <add>, %99, %cst_32 [1] : vector<17x32xf32> to vector<17xf32>
    %101 = vector.shape_cast %100 : vector<17xf32> to vector<17x1xf32>
    %cst_33 = arith.constant 3.200000e+01 : f32
    %102 = vector.broadcast %cst_33 : f32 to vector<17x1xf32>
    %103 = arith.divf %101, %102 : vector<17x1xf32>
    %cst_34 = arith.constant 9.99999974E-6 : f32
    %104 = vector.broadcast %cst_34 : f32 to vector<17x1xf32>
    %105 = arith.addf %103, %104 : vector<17x1xf32>
    %106 = math.rsqrt %105 : vector<17x1xf32>
    %107 = vector.broadcast %106 : vector<17x1xf32> to vector<17x32xf32>
    %108 = arith.mulf %98, %107 : vector<17x32xf32>
    %109 = vector.broadcast %91 : vector<1x32xf32> to vector<17x32xf32>
    %110 = arith.mulf %108, %109 : vector<17x32xf32>
    %111 = vector.broadcast %92 : vector<1x32xf32> to vector<17x32xf32>
    %112 = arith.addf %110, %111 : vector<17x32xf32>
    %113 = arith.truncf %112 : vector<17x32xf32> to vector<17x32xbf16>
    %c0_35 = arith.constant 0 : index
    %c0_36 = arith.constant 0 : index
    %c0_37 = arith.constant 0 : index
    %114 = vector.load %arg12[%c0_35, %c0_36, %c0_37] : memref<1x32x128xbf16, #tpu.memory_space<vmem>>, vector<1x32x128xbf16>
    %115 = vector.shape_cast %114 : vector<1x32x128xbf16> to vector<32x128xbf16>
    %cst_38 = arith.constant dense<0.000000e+00> : vector<17x128xf32>
    %116 = tpu.matmul %113, %115, %cst_38 {dimension_numbers = #tpu.dot_dimension_numbers<[1], [0], [0], [1], [0, 0, 1, 1], [], []>} : vector<17x32xbf16>, vector<32x128xbf16>, vector<17x128xf32> -> vector<17x128xf32>
    %c0_39 = arith.constant 0 : index
    %c0_40 = arith.constant 0 : index
    %c0_41 = arith.constant 0 : index
    %117 = vector.load %arg13[%c0_39, %c0_40, %c0_41] : memref<1x1x128xf32, #tpu.memory_space<vmem>>, vector<1x1x128xf32>
    %118 = vector.shape_cast %117 : vector<1x1x128xf32> to vector<1x128xf32>
    %119 = vector.broadcast %118 : vector<1x128xf32> to vector<17x128xf32>
    %120 = arith.addf %116, %119 : vector<17x128xf32>
    %cst_42 = arith.constant 5.000000e-01 : f32
    %121 = vector.broadcast %cst_42 : f32 to vector<17x128xf32>
    %122 = arith.mulf %121, %120 : vector<17x128xf32>
    %cst_43 = arith.constant 4.471500e-02 : f32
    %123 = vector.broadcast %cst_43 : f32 to vector<17x128xf32>
    %124 = arith.mulf %123, %120 : vector<17x128xf32>
    %125 = arith.mulf %124, %120 : vector<17x128xf32>
    %126 = arith.mulf %125, %120 : vector<17x128xf32>
    %127 = arith.addf %120, %126 : vector<17x128xf32>
    %cst_44 = arith.constant 0.797884583 : f32
    %128 = vector.broadcast %cst_44 : f32 to vector<17x128xf32>
    %129 = arith.mulf %128, %127 : vector<17x128xf32>
    %130 = math.tanh %129 : vector<17x128xf32>
    %cst_45 = arith.constant 1.000000e+00 : f32
    %131 = vector.broadcast %cst_45 : f32 to vector<17x128xf32>
    %132 = arith.addf %131, %130 : vector<17x128xf32>
    %133 = arith.mulf %122, %132 : vector<17x128xf32>
    %134 = arith.truncf %133 : vector<17x128xf32> to vector<17x128xbf16>
    %c0_46 = arith.constant 0 : index
    %c0_47 = arith.constant 0 : index
    %c0_48 = arith.constant 0 : index
    %135 = vector.load %arg14[%c0_46, %c0_47, %c0_48] : memref<1x128x32xbf16, #tpu.memory_space<vmem>>, vector<1x128x32xbf16>
    %136 = vector.shape_cast %135 : vector<1x128x32xbf16> to vector<128x32xbf16>
    %cst_49 = arith.constant dense<0.000000e+00> : vector<17x32xf32>
    %137 = tpu.matmul %134, %136, %cst_49 {dimension_numbers = #tpu.dot_dimension_numbers<[1], [0], [0], [1], [0, 0, 1, 1], [], []>} : vector<17x128xbf16>, vector<128x32xbf16>, vector<17x32xf32> -> vector<17x32xf32>
    %c0_50 = arith.constant 0 : index
    %c0_51 = arith.constant 0 : index
    %c0_52 = arith.constant 0 : index
    %138 = vector.load %arg15[%c0_50, %c0_51, %c0_52] : memref<1x1x32xf32, #tpu.memory_space<vmem>>, vector<1x1x32xf32>
    %139 = vector.shape_cast %138 : vector<1x1x32xf32> to vector<1x32xf32>
    %140 = vector.broadcast %139 : vector<1x32xf32> to vector<17x32xf32>
    %141 = arith.addf %137, %140 : vector<17x32xf32>
    %142 = arith.addf %90, %141 : vector<17x32xf32>
    %c0_53 = arith.constant 0 : index
    %c0_54 = arith.constant 0 : index
    %143 = vector.load %arg23[%c0_53, %c0_54] : memref<17x32xf32, #tpu.memory_space<vmem>>, vector<17x32xf32>
    tpu.vector_store %arg23[%c0_53, %c0_54], %142 {strides = array<i32>} : memref<17x32xf32, #tpu.memory_space<vmem>>, vector<17x32xf32>,
    %c1_i32 = arith.constant 1 : i32
    %144 = arith.cmpi eq, %arg1, %c1_i32 : i32
    %145 = arith.extui %144 : i1 to i32
    %c0_i32_55 = arith.constant 0 : i32
    %146 = arith.cmpi ne, %145, %c0_i32_55 : i32
    scf.if %146 {
      %147 = vector.extract_strided_slice %142 {offsets = [16, 0], sizes = [1, 32], strides = [1, 1]} : vector<17x32xf32> to vector<1x32xf32>
      %c0_56 = arith.constant 0 : index
      %c0_57 = arith.constant 0 : index
      %148 = vector.load %arg16[%c0_56, %c0_57] : memref<1x32xf32, #tpu.memory_space<vmem>>, vector<1x32xf32>
      %c0_58 = arith.constant 0 : index
      %c0_59 = arith.constant 0 : index
      %149 = vector.load %arg17[%c0_58, %c0_59] : memref<1x32xf32, #tpu.memory_space<vmem>>, vector<1x32xf32>
      %cst_60 = arith.constant dense<0.000000e+00> : vector<1xf32>
      %150 = vector.multi_reduction <add>, %147, %cst_60 [1] : vector<1x32xf32> to vector<1xf32>
      %151 = vector.shape_cast %150 : vector<1xf32> to vector<1x1xf32>
      %cst_61 = arith.constant 3.200000e+01 : f32
      %152 = vector.broadcast %cst_61 : f32 to vector<1x1xf32>
      %153 = arith.divf %151, %152 : vector<1x1xf32>
      %154 = vector.broadcast %153 : vector<1x1xf32> to vector<1x32xf32>
      %155 = arith.subf %147, %154 : vector<1x32xf32>
      %156 = arith.mulf %155, %155 : vector<1x32xf32>
      %cst_62 = arith.constant dense<0.000000e+00> : vector<1xf32>
      %157 = vector.multi_reduction <add>, %156, %cst_62 [1] : vector<1x32xf32> to vector<1xf32>
      %158 = vector.shape_cast %157 : vector<1xf32> to vector<1x1xf32>
      %cst_63 = arith.constant 3.200000e+01 : f32
      %159 = vector.broadcast %cst_63 : f32 to vector<1x1xf32>
      %160 = arith.divf %158, %159 : vector<1x1xf32>
      %cst_64 = arith.constant 9.99999974E-6 : f32
      %161 = vector.broadcast %cst_64 : f32 to vector<1x1xf32>
      %162 = arith.addf %160, %161 : vector<1x1xf32>
      %163 = math.rsqrt %162 : vector<1x1xf32>
      %164 = vector.broadcast %163 : vector<1x1xf32> to vector<1x32xf32>
      %165 = arith.mulf %155, %164 : vector<1x32xf32>
      %166 = arith.mulf %165, %148 : vector<1x32xf32>
      %167 = arith.addf %166, %149 : vector<1x32xf32>
      %168 = arith.truncf %167 : vector<1x32xf32> to vector<1x32xbf16>
      %c0_65 = arith.constant 0 : index
      %c0_66 = arith.constant 0 : index
      %169 = vector.load %arg18[%c0_65, %c0_66] : memref<32x64xbf16, #tpu.memory_space<vmem>>, vector<32x64xbf16>
      %cst_67 = arith.constant dense<0.000000e+00> : vector<1x64xf32>
      %170 = tpu.matmul %168, %169, %cst_67 {dimension_numbers = #tpu.dot_dimension_numbers<[1], [0], [0], [1], [0, 0, 1, 1], [], []>} : vector<1x32xbf16>, vector<32x64xbf16>, vector<1x64xf32> -> vector<1x64xf32>
      %c0_68 = arith.constant 0 : index
      %c0_69 = arith.constant 0 : index
      %171 = vector.load %arg19[%c0_68, %c0_69] : memref<1x64xf32, #tpu.memory_space<vmem>>, vector<1x64xf32>
      %172 = arith.addf %170, %171 : vector<1x64xf32>
      %cst_70 = arith.constant 5.000000e-01 : f32
      %173 = vector.broadcast %cst_70 : f32 to vector<1x64xf32>
      %174 = arith.mulf %173, %172 : vector<1x64xf32>
      %cst_71 = arith.constant 4.471500e-02 : f32
      %175 = vector.broadcast %cst_71 : f32 to vector<1x64xf32>
      %176 = arith.mulf %175, %172 : vector<1x64xf32>
      %177 = arith.mulf %176, %172 : vector<1x64xf32>
      %178 = arith.mulf %177, %172 : vector<1x64xf32>
      %179 = arith.addf %172, %178 : vector<1x64xf32>
      %cst_72 = arith.constant 0.797884583 : f32
      %180 = vector.broadcast %cst_72 : f32 to vector<1x64xf32>
      %181 = arith.mulf %180, %179 : vector<1x64xf32>
      %182 = math.tanh %181 : vector<1x64xf32>
      %cst_73 = arith.constant 1.000000e+00 : f32
      %183 = vector.broadcast %cst_73 : f32 to vector<1x64xf32>
      %184 = arith.addf %183, %182 : vector<1x64xf32>
      %185 = arith.mulf %174, %184 : vector<1x64xf32>
      %186 = arith.truncf %185 : vector<1x64xf32> to vector<1x64xbf16>
      %c0_74 = arith.constant 0 : index
      %c0_75 = arith.constant 0 : index
      %187 = vector.load %arg20[%c0_74, %c0_75] : memref<64x10xbf16, #tpu.memory_space<vmem>>, vector<64x10xbf16>
      %cst_76 = arith.constant dense<0.000000e+00> : vector<1x10xf32>
      %188 = tpu.matmul %186, %187, %cst_76 {dimension_numbers = #tpu.dot_dimension_numbers<[1], [0], [0], [1], [0, 0, 1, 1], [], []>} : vector<1x64xbf16>, vector<64x10xbf16>, vector<1x10xf32> -> vector<1x10xf32>
      %c0_77 = arith.constant 0 : index
      %c0_78 = arith.constant 0 : index
      %189 = vector.load %arg21[%c0_77, %c0_78] : memref<1x10xf32, #tpu.memory_space<vmem>>, vector<1x10xf32>
      %190 = arith.addf %188, %189 : vector<1x10xf32>
      %cst_79 = arith.constant dense<0xFF800000> : vector<1xf32>
      %191 = vector.multi_reduction <maximumf>, %190, %cst_79 [1] : vector<1x10xf32> to vector<1xf32>
      %192 = vector.shape_cast %191 : vector<1xf32> to vector<1x1xf32>
      %193 = vector.broadcast %192 : vector<1x1xf32> to vector<1x10xf32>
      %194 = arith.subf %190, %193 : vector<1x10xf32>
      %195 = math.exp %194 : vector<1x10xf32>
      %cst_80 = arith.constant dense<0.000000e+00> : vector<1xf32>
      %196 = vector.multi_reduction <add>, %195, %cst_80 [1] : vector<1x10xf32> to vector<1xf32>
      %197 = vector.shape_cast %196 : vector<1xf32> to vector<1x1xf32>
      %198 = math.log %197 : vector<1x1xf32>
      %199 = vector.broadcast %198 : vector<1x1xf32> to vector<1x10xf32>
      %200 = arith.subf %194, %199 : vector<1x10xf32>
      %c0_81 = arith.constant 0 : index
      %c0_82 = arith.constant 0 : index
      %c0_83 = arith.constant 0 : index
      %201 = vector.load %arg22[%c0_81, %c0_82, %c0_83] : memref<1x1x10xf32, #tpu.memory_space<vmem>>, vector<1x1x10xf32>
      %202 = vector.shape_cast %201 : vector<1x1x10xf32> to vector<1x10xf32>
      %203 = vector.shape_cast %200 : vector<1x10xf32> to vector<1x1x10xf32>
      tpu.vector_store %arg22[%c0_81, %c0_82, %c0_83], %203 {strides = array<i32>} : memref<1x1x10xf32, #tpu.memory_space<vmem>>, vector<1x1x10xf32>,
    } else {
    }
    return
  }
  func.func @transform_0(%arg0: i32, %arg1: i32) -> (i32, i32, i32) {
    %c0_i32 = arith.constant 0 : i32
    %c0_i32_0 = arith.constant 0 : i32
    %c0_i32_1 = arith.constant 0 : i32
    return %arg0, %c0_i32, %c0_i32_0 : i32, i32, i32
  }
  func.func @transform_1(%arg0: i32, %arg1: i32) -> (i32, i32) {
    %c0_i32 = arith.constant 0 : i32
    %c0_i32_0 = arith.constant 0 : i32
    %c0_i32_1 = arith.constant 0 : i32
    return %c0_i32, %c0_i32_0 : i32, i32
  }
  func.func @transform_2(%arg0: i32, %arg1: i32) -> (i32, i32) {
    %c0_i32 = arith.constant 0 : i32
    %c0_i32_0 = arith.constant 0 : i32
    %c0_i32_1 = arith.constant 0 : i32
    return %c0_i32, %c0_i32_0 : i32, i32
  }
  func.func @transform_3(%arg0: i32, %arg1: i32) -> (i32, i32) {
    %c0_i32 = arith.constant 0 : i32
    %c0_i32_0 = arith.constant 0 : i32
    %c0_i32_1 = arith.constant 0 : i32
    return %c0_i32, %c0_i32_0 : i32, i32
  }
  func.func @transform_4(%arg0: i32, %arg1: i32) -> (i32, i32) {
    %c0_i32 = arith.constant 0 : i32
    %c0_i32_0 = arith.constant 0 : i32
    %c0_i32_1 = arith.constant 0 : i32
    return %c0_i32, %c0_i32_0 : i32, i32
  }
  func.func @transform_5(%arg0: i32, %arg1: i32) -> (i32, i32, i32) {
    %c0_i32 = arith.constant 0 : i32
    %c0_i32_0 = arith.constant 0 : i32
    %c0_i32_1 = arith.constant 0 : i32
    return %arg1, %c0_i32, %c0_i32_0 : i32, i32, i32
  }
  func.func @transform_6(%arg0: i32, %arg1: i32) -> (i32, i32, i32) {
    %c0_i32 = arith.constant 0 : i32
    %c0_i32_0 = arith.constant 0 : i32
    %c0_i32_1 = arith.constant 0 : i32
    return %arg1, %c0_i32, %c0_i32_0 : i32, i32, i32
  }
  func.func @transform_7(%arg0: i32, %arg1: i32) -> (i32, i32, i32) {
    %c0_i32 = arith.constant 0 : i32
    %c0_i32_0 = arith.constant 0 : i32
    %c0_i32_1 = arith.constant 0 : i32
    return %arg1, %c0_i32, %c0_i32_0 : i32, i32, i32
  }
  func.func @transform_8(%arg0: i32, %arg1: i32) -> (i32, i32, i32, i32) {
    %c0_i32 = arith.constant 0 : i32
    %c0_i32_0 = arith.constant 0 : i32
    %c0_i32_1 = arith.constant 0 : i32
    %c0_i32_2 = arith.constant 0 : i32
    return %arg1, %c0_i32, %c0_i32_0, %c0_i32_1 : i32, i32, i32, i32
  }
  func.func @transform_9(%arg0: i32, %arg1: i32) -> (i32, i32, i32) {
    %c0_i32 = arith.constant 0 : i32
    %c0_i32_0 = arith.constant 0 : i32
    %c0_i32_1 = arith.constant 0 : i32
    return %arg1, %c0_i32, %c0_i32_0 : i32, i32, i32
  }
  func.func @transform_10(%arg0: i32, %arg1: i32) -> (i32, i32, i32) {
    %c0_i32 = arith.constant 0 : i32
    %c0_i32_0 = arith.constant 0 : i32
    %c0_i32_1 = arith.constant 0 : i32
    return %arg1, %c0_i32, %c0_i32_0 : i32, i32, i32
  }
  func.func @transform_11(%arg0: i32, %arg1: i32) -> (i32, i32, i32) {
    %c0_i32 = arith.constant 0 : i32
    %c0_i32_0 = arith.constant 0 : i32
    %c0_i32_1 = arith.constant 0 : i32
    return %arg1, %c0_i32, %c0_i32_0 : i32, i32, i32
  }
  func.func @transform_12(%arg0: i32, %arg1: i32) -> (i32, i32, i32) {
    %c0_i32 = arith.constant 0 : i32
    %c0_i32_0 = arith.constant 0 : i32
    %c0_i32_1 = arith.constant 0 : i32
    return %arg1, %c0_i32, %c0_i32_0 : i32, i32, i32
  }
  func.func @transform_13(%arg0: i32, %arg1: i32) -> (i32, i32, i32) {
    %c0_i32 = arith.constant 0 : i32
    %c0_i32_0 = arith.constant 0 : i32
    %c0_i32_1 = arith.constant 0 : i32
    return %arg1, %c0_i32, %c0_i32_0 : i32, i32, i32
  }
  func.func @transform_14(%arg0: i32, %arg1: i32) -> (i32, i32) {
    %c0_i32 = arith.constant 0 : i32
    %c0_i32_0 = arith.constant 0 : i32
    %c0_i32_1 = arith.constant 0 : i32
    return %c0_i32, %c0_i32_0 : i32, i32
  }
  func.func @transform_15(%arg0: i32, %arg1: i32) -> (i32, i32) {
    %c0_i32 = arith.constant 0 : i32
    %c0_i32_0 = arith.constant 0 : i32
    %c0_i32_1 = arith.constant 0 : i32
    return %c0_i32, %c0_i32_0 : i32, i32
  }
  func.func @transform_16(%arg0: i32, %arg1: i32) -> (i32, i32) {
    %c0_i32 = arith.constant 0 : i32
    %c0_i32_0 = arith.constant 0 : i32
    %c0_i32_1 = arith.constant 0 : i32
    return %c0_i32, %c0_i32_0 : i32, i32
  }
  func.func @transform_17(%arg0: i32, %arg1: i32) -> (i32, i32) {
    %c0_i32 = arith.constant 0 : i32
    %c0_i32_0 = arith.constant 0 : i32
    %c0_i32_1 = arith.constant 0 : i32
    return %c0_i32, %c0_i32_0 : i32, i32
  }
  func.func @transform_18(%arg0: i32, %arg1: i32) -> (i32, i32) {
    %c0_i32 = arith.constant 0 : i32
    %c0_i32_0 = arith.constant 0 : i32
    %c0_i32_1 = arith.constant 0 : i32
    return %c0_i32, %c0_i32_0 : i32, i32
  }
  func.func @transform_19(%arg0: i32, %arg1: i32) -> (i32, i32) {
    %c0_i32 = arith.constant 0 : i32
    %c0_i32_0 = arith.constant 0 : i32
    %c0_i32_1 = arith.constant 0 : i32
    return %c0_i32, %c0_i32_0 : i32, i32
  }
  func.func @transform_20(%arg0: i32, %arg1: i32) -> (i32, i32, i32) {
    %c0_i32 = arith.constant 0 : i32
    %c0_i32_0 = arith.constant 0 : i32
    %c0_i32_1 = arith.constant 0 : i32
    return %arg0, %c0_i32, %c0_i32_0 : i32, i32, i32
  }
}

</mosaic_0001>

<llo_original>
// kernel: tpu_custom_call.1
$region0: #{tpu_custom_call.1}
  #allocation0 [shape = 'u32[]', space=smem, size = 0x4, offset = 0x4, fixed_abs, tag = 'smem constant byte address 0x4 - core index']
  #allocation1 [shape = 'u32[72,128]{1,0:T(1,128)}', space=vmem, size = 0x9000, scoped, tag = 'internal scratch']
  #allocation2 [shape = 'f32[17,32]{1,0:T(8,128)}', space=vmem, size = 0x3000, scoped, tag = 'scratch operand']
  %s0 = inlined_call_operand.vmem [shape: f32[2,16,64], index: 0, kind: input, shape index: {}]
  %s1 = inlined_call_operand.vmem [shape: bf16[64,32], index: 1, kind: input, shape index: {}]
  %s2 = inlined_call_operand.vmem [shape: f32[1,32], index: 2, kind: input, shape index: {}]
  %s3 = inlined_call_operand.vmem [shape: f32[1,32], index: 3, kind: input, shape index: {}]
  %s4 = inlined_call_operand.vmem [shape: f32[17,32], index: 4, kind: input, shape index: {}]
  %s5 = inlined_call_operand.vmem [shape: f32[2,4,32], index: 5, kind: input, shape index: {}]
  %s6 = inlined_call_operand.vmem [shape: bf16[2,32,96], index: 6, kind: input, shape index: {}]
  %s7 = inlined_call_operand.vmem [shape: f32[2,1,96], index: 7, kind: input, shape index: {}]
  %s8 = inlined_call_operand.vmem [shape: bf16[2,4,8,32], index: 8, kind: input, shape index: {}]
  %s9 = inlined_call_operand.vmem [shape: f32[2,1,32], index: 9, kind: input, shape index: {}]
  %s10 = inlined_call_operand.vmem [shape: bf16[2,32,128], index: 10, kind: input, shape index: {}]
  %s11 = inlined_call_operand.vmem [shape: f32[2,1,128], index: 11, kind: input, shape index: {}]
  %s12 = inlined_call_operand.vmem [shape: bf16[2,128,32], index: 12, kind: input, shape index: {}]
  %s13 = inlined_call_operand.vmem [shape: f32[2,1,32], index: 13, kind: input, shape index: {}]
  %s14 = inlined_call_operand.vmem [shape: f32[1,32], index: 14, kind: input, shape index: {}]
  %s15 = inlined_call_operand.vmem [shape: f32[1,32], index: 15, kind: input, shape index: {}]
  %s16 = inlined_call_operand.vmem [shape: bf16[32,64], index: 16, kind: input, shape index: {}]
  %s17 = inlined_call_operand.vmem [shape: f32[1,64], index: 17, kind: input, shape index: {}]
  %s18 = inlined_call_operand.vmem [shape: bf16[64,10], index: 18, kind: input, shape index: {}]
  %s19 = inlined_call_operand.vmem [shape: f32[1,10], index: 19, kind: input, shape index: {}]
  %s20 = inlined_call_operand.hbm [shape: f32[2,1,10], index: 20, kind: output, shape index: {}]
  %s21 = sld [smem:[#allocation0]]
  $region121: #{tpu_custom_call.1} parent=0
    _
  %s23 = ssub.s32 1, %s21
  %s24 = scalar_select 0, %s23, %s21
  $region1: #{tpu_custom_call.1} parent=0
    #allocation3 [shape = 'u8[1024]{0}', space=vmem, size = 0x400, scoped, tag = 'output window, operand 0']
    #allocation4 [shape = 's32[2]{0}', space=sflag, size = 0x8, scoped, tag = 'scoped memory for tpu_custom_call.1']
    %25 = vsyncpa [#allocation4], 0
    %s26 = scalar_lea.sflag [#allocation4], 1
    %27 = vsyncpa %s26, 0
    loop: start=0, step=1, limit=6
    $region2: #{tpu_custom_call.1} parent=1 // loop_pre_header
      _
    $region3: #{tpu_custom_call.1} parent=1 // loop_header
      %s29 = sphi 0, %s33
      %p30 = scmp.ge.s32.totalorder %s29, 6
      %s36 = sphi 0, %s48
      %s37 = sphi 0, %s44
      %s38 = sphi 0, %s36
      %s39 = sphi 0, %s37
      %s40 = sphi 0, %s38
      %s41 = sphi 0, %s39
      %s51 = sphi 0, %s53
      %s54 = sphi 0, %s51
      %s55 = sphi 0, %s54
      %s71 = sphi 0, %s55
      %s75 = sphi 0, %s75
      %s77 = sphi 0, %s75
      %s78 = sphi 0, %s77
      %s92 = sphi 0, %s78
      %s96 = sphi 0, %s96
      %s98 = sphi 0, %s96
      %s99 = sphi 0, %s98
      %s113 = sphi 0, %s99
      %s117 = sphi 0, %s117
      %s119 = sphi 0, %s117
      %s120 = sphi 0, %s119
      %s134 = sphi 0, %s120
      %s138 = sphi 0, %s138
      %s140 = sphi 0, %s138
      %s141 = sphi 0, %s140
      %s155 = sphi 0, %s141
      %s161 = sphi 0, %s163
      %s164 = sphi 0, %s161
      %s165 = sphi 0, %s164
      %s181 = sphi 0, %s165
      %s187 = sphi 0, %s189
      %s190 = sphi 0, %s187
      %s191 = sphi 0, %s190
      %s207 = sphi 0, %s191
      %s213 = sphi 0, %s215
      %s216 = sphi 0, %s213
      %s217 = sphi 0, %s216
      %s233 = sphi 0, %s217
      %s239 = sphi 0, %s241
      %s242 = sphi 0, %s239
      %s243 = sphi 0, %s242
      %s259 = sphi 0, %s243
      %s265 = sphi 0, %s267
      %s268 = sphi 0, %s265
      %s269 = sphi 0, %s268
      %s285 = sphi 0, %s269
      %s291 = sphi 0, %s293
      %s294 = sphi 0, %s291
      %s295 = sphi 0, %s294
      %s311 = sphi 0, %s295
      %s317 = sphi 0, %s319
      %s320 = sphi 0, %s317
      %s321 = sphi 0, %s320
      %s337 = sphi 0, %s321
      %s343 = sphi 0, %s345
      %s346 = sphi 0, %s343
      %s347 = sphi 0, %s346
      %s363 = sphi 0, %s347
      %s369 = sphi 0, %s371
      %s372 = sphi 0, %s369
      %s373 = sphi 0, %s372
      %s389 = sphi 0, %s373
      %s393 = sphi 0, %s393
      %s395 = sphi 0, %s393
      %s396 = sphi 0, %s395
      %s410 = sphi 0, %s396
      %s414 = sphi 0, %s414
      %s416 = sphi 0, %s414
      %s417 = sphi 0, %s416
      %s431 = sphi 0, %s417
      %s435 = sphi 0, %s435
      %s437 = sphi 0, %s435
      %s438 = sphi 0, %s437
      %s452 = sphi 0, %s438
      %s456 = sphi 0, %s456
      %s458 = sphi 0, %s456
      %s459 = sphi 0, %s458
      %s473 = sphi 0, %s459
      %s477 = sphi 0, %s477
      %s479 = sphi 0, %s477
      %s480 = sphi 0, %s479
      %s494 = sphi 0, %s480
      %s498 = sphi 0, %s498
      %s500 = sphi 0, %s498
      %s501 = sphi 0, %s500
      %s515 = sphi 0, %s501
      %s521 = sphi 0, %s523
      %s524 = sphi 0, %s521
      %s525 = sphi 0, %s524
      %s541 = sphi 0, %s525
    $region4: #{tpu_custom_call.1} parent=1 // loop_header_branch
      %32 = sbr.rel (%p30) target = $region8
    $region5: #{tpu_custom_call.1} parent=1 // loop_body
      %s34 = ssub.s32 %s29, 1
      %s35 = ssub.s32 %s29, 2
      %s42 = sadd.s32 1, %s37
      %p43 = scmp.ge.s32.totalorder %s42, 2
      %s44 = scalar_select %p43, 0, %s42
      %s45 = sadd.s32 1, %s36
      %s46 = scalar_select %p43, %s45, %s36
      %p47 = scmp.ge.s32.totalorder %s46, 2
      %s48 = scalar_select %p47, 0, %s46
      %s49 = ssub.s32 %s36, %s48
      %p50 = scmp.eq.s32.totalorder %s49, 0
      %s52 = sadd.s32 %s51, 1
      %s53 = scalar_select %p50, %s51, %s52
      %p56 = pneg %p50
      %p57 = scmp.eq.s32.totalorder %s29, 3
      %p58 = por %p56, %p57
      %p59 = scmp.ne.s32.totalorder %s51, %s54
      %p60 = scmp.eq.s32.totalorder %s29, 0
      %p61 = por %p59, %p60
      %p62 = scmp.ne.s32.totalorder %s51, %s54
      %p63 = scmp.eq.s32.totalorder %s34, 3
      %p64 = por %p62, %p63
      %p65 = scmp.ne.s32.totalorder %s54, %s55
      %p66 = scmp.eq.s32.totalorder %s34, 0
      %p67 = por %p65, %p66
      %p68 = scmp.ne.s32.totalorder %s54, %s55
      %p69 = scmp.eq.s32.totalorder %s35, 3
      %p70 = por %p68, %p69
      %p72 = scmp.ne.s32.totalorder %s55, %s71
      %p73 = scmp.eq.s32.totalorder %s35, 0
      %p74 = por %p72, %p73
      %s76 = sadd.s32 %s75, 1
      %p79 = scmp.eq.s32.totalorder %s29, 3
      %p80 = scmp.ne.s32.totalorder %s75, %s77
      %p81 = scmp.eq.s32.totalorder %s29, 0
      %p82 = por %p80, %p81
      %p83 = scmp.ne.s32.totalorder %s75, %s77
      %p84 = scmp.eq.s32.totalorder %s34, 3
      %p85 = por %p83, %p84
      %p86 = scmp.ne.s32.totalorder %s77, %s78
      %p87 = scmp.eq.s32.totalorder %s34, 0
      %p88 = por %p86, %p87
      %p89 = scmp.ne.s32.totalorder %s77, %s78
      %p90 = scmp.eq.s32.totalorder %s35, 3
      %p91 = por %p89, %p90
      %p93 = scmp.ne.s32.totalorder %s78, %s92
      %p94 = scmp.eq.s32.totalorder %s35, 0
      %p95 = por %p93, %p94
      %s97 = sadd.s32 %s96, 1
      %p100 = scmp.eq.s32.totalorder %s29, 3
      %p101 = scmp.ne.s32.totalorder %s96, %s98
      %p102 = scmp.eq.s32.totalorder %s29, 0
      %p103 = por %p101, %p102
      %p104 = scmp.ne.s32.totalorder %s96, %s98
      %p105 = scmp.eq.s32.totalorder %s34, 3
      %p106 = por %p104, %p105
      %p107 = scmp.ne.s32.totalorder %s98, %s99
      %p108 = scmp.eq.s32.totalorder %s34, 0
      %p109 = por %p107, %p108
      %p110 = scmp.ne.s32.totalorder %s98, %s99
      %p111 = scmp.eq.s32.totalorder %s35, 3
      %p112 = por %p110, %p111
      %p114 = scmp.ne.s32.totalorder %s99, %s113
      %p115 = scmp.eq.s32.totalorder %s35, 0
      %p116 = por %p114, %p115
      %s118 = sadd.s32 %s117, 1
      %p121 = scmp.eq.s32.totalorder %s29, 3
      %p122 = scmp.ne.s32.totalorder %s117, %s119
      %p123 = scmp.eq.s32.totalorder %s29, 0
      %p124 = por %p122, %p123
      %p125 = scmp.ne.s32.totalorder %s117, %s119
      %p126 = scmp.eq.s32.totalorder %s34, 3
      %p127 = por %p125, %p126
      %p128 = scmp.ne.s32.totalorder %s119, %s120
      %p129 = scmp.eq.s32.totalorder %s34, 0
      %p130 = por %p128, %p129
      %p131 = scmp.ne.s32.totalorder %s119, %s120
      %p132 = scmp.eq.s32.totalorder %s35, 3
      %p133 = por %p131, %p132
      %p135 = scmp.ne.s32.totalorder %s120, %s134
      %p136 = scmp.eq.s32.totalorder %s35, 0
      %p137 = por %p135, %p136
      %s139 = sadd.s32 %s138, 1
      %p142 = scmp.eq.s32.totalorder %s29, 3
      %p143 = scmp.ne.s32.totalorder %s138, %s140
      %p144 = scmp.eq.s32.totalorder %s29, 0
      %p145 = por %p143, %p144
      %p146 = scmp.ne.s32.totalorder %s138, %s140
      %p147 = scmp.eq.s32.totalorder %s34, 3
      %p148 = por %p146, %p147
      %p149 = scmp.ne.s32.totalorder %s140, %s141
      %p150 = scmp.eq.s32.totalorder %s34, 0
      %p151 = por %p149, %p150
      %p152 = scmp.ne.s32.totalorder %s140, %s141
      %p153 = scmp.eq.s32.totalorder %s35, 3
      %p154 = por %p152, %p153
      %p156 = scmp.ne.s32.totalorder %s141, %s155
      %p157 = scmp.eq.s32.totalorder %s35, 0
      %p158 = por %p156, %p157
      %s159 = ssub.s32 %s37, %s44
      %p160 = scmp.eq.s32.totalorder %s159, 0
      %s162 = sadd.s32 %s161, 1
      %s163 = scalar_select %p160, %s161, %s162
      %p166 = pneg %p160
      %p167 = scmp.eq.s32.totalorder %s29, 3
      %p168 = por %p166, %p167
      %p169 = scmp.ne.s32.totalorder %s161, %s164
      %p170 = scmp.eq.s32.totalorder %s29, 0
      %p171 = por %p169, %p170
      %p172 = scmp.ne.s32.totalorder %s161, %s164
      %p173 = scmp.eq.s32.totalorder %s34, 3
      %p174 = por %p172, %p173
      %p175 = scmp.ne.s32.totalorder %s164, %s165
      %p176 = scmp.eq.s32.totalorder %s34, 0
      %p177 = por %p175, %p176
      %p178 = scmp.ne.s32.totalorder %s164, %s165
      %p179 = scmp.eq.s32.totalorder %s35, 3
      %p180 = por %p178, %p179
      %p182 = scmp.ne.s32.totalorder %s165, %s181
      %p183 = scmp.eq.s32.totalorder %s35, 0
      %p184 = por %p182, %p183
      %s185 = ssub.s32 %s37, %s44
      %p186 = scmp.eq.s32.totalorder %s185, 0
      %s188 = sadd.s32 %s187, 1
      %s189 = scalar_select %p186, %s187, %s188
      %p192 = pneg %p186
      %p193 = scmp.eq.s32.totalorder %s29, 3
      %p194 = por %p192, %p193
      %p195 = scmp.ne.s32.totalorder %s187, %s190
      %p196 = scmp.eq.s32.totalorder %s29, 0
      %p197 = por %p195, %p196
      %p198 = scmp.ne.s32.totalorder %s187, %s190
      %p199 = scmp.eq.s32.totalorder %s34, 3
      %p200 = por %p198, %p199
      %p201 = scmp.ne.s32.totalorder %s190, %s191
      %p202 = scmp.eq.s32.totalorder %s34, 0
      %p203 = por %p201, %p202
      %p204 = scmp.ne.s32.totalorder %s190, %s191
      %p205 = scmp.eq.s32.totalorder %s35, 3
      %p206 = por %p204, %p205
      %p208 = scmp.ne.s32.totalorder %s191, %s207
      %p209 = scmp.eq.s32.totalorder %s35, 0
      %p210 = por %p208, %p209
      %s211 = ssub.s32 %s37, %s44
      %p212 = scmp.eq.s32.totalorder %s211, 0
      %s214 = sadd.s32 %s213, 1
      %s215 = scalar_select %p212, %s213, %s214
      %p218 = pneg %p212
      %p219 = scmp.eq.s32.totalorder %s29, 3
      %p220 = por %p218, %p219
      %p221 = scmp.ne.s32.totalorder %s213, %s216
      %p222 = scmp.eq.s32.totalorder %s29, 0
      %p223 = por %p221, %p222
      %p224 = scmp.ne.s32.totalorder %s213, %s216
      %p225 = scmp.eq.s32.totalorder %s34, 3
      %p226 = por %p224, %p225
      %p227 = scmp.ne.s32.totalorder %s216, %s217
      %p228 = scmp.eq.s32.totalorder %s34, 0
      %p229 = por %p227, %p228
      %p230 = scmp.ne.s32.totalorder %s216, %s217
      %p231 = scmp.eq.s32.totalorder %s35, 3
      %p232 = por %p230, %p231
      %p234 = scmp.ne.s32.totalorder %s217, %s233
      %p235 = scmp.eq.s32.totalorder %s35, 0
      %p236 = por %p234, %p235
      %s237 = ssub.s32 %s37, %s44
      %p238 = scmp.eq.s32.totalorder %s237, 0
      %s240 = sadd.s32 %s239, 1
      %s241 = scalar_select %p238, %s239, %s240
      %p244 = pneg %p238
      %p245 = scmp.eq.s32.totalorder %s29, 3
      %p246 = por %p244, %p245
      %p247 = scmp.ne.s32.totalorder %s239, %s242
      %p248 = scmp.eq.s32.totalorder %s29, 0
      %p249 = por %p247, %p248
      %p250 = scmp.ne.s32.totalorder %s239, %s242
      %p251 = scmp.eq.s32.totalorder %s34, 3
      %p252 = por %p250, %p251
      %p253 = scmp.ne.s32.totalorder %s242, %s243
      %p254 = scmp.eq.s32.totalorder %s34, 0
      %p255 = por %p253, %p254
      %p256 = scmp.ne.s32.totalorder %s242, %s243
      %p257 = scmp.eq.s32.totalorder %s35, 3
      %p258 = por %p256, %p257
      %p260 = scmp.ne.s32.totalorder %s243, %s259
      %p261 = scmp.eq.s32.totalorder %s35, 0
      %p262 = por %p260, %p261
      %s263 = ssub.s32 %s37, %s44
      %p264 = scmp.eq.s32.totalorder %s263, 0
      %s266 = sadd.s32 %s265, 1
      %s267 = scalar_select %p264, %s265, %s266
      %p270 = pneg %p264
      %p271 = scmp.eq.s32.totalorder %s29, 3
      %p272 = por %p270, %p271
      %p273 = scmp.ne.s32.totalorder %s265, %s268
      %p274 = scmp.eq.s32.totalorder %s29, 0
      %p275 = por %p273, %p274
      %p276 = scmp.ne.s32.totalorder %s265, %s268
      %p277 = scmp.eq.s32.totalorder %s34, 3
      %p278 = por %p276, %p277
      %p279 = scmp.ne.s32.totalorder %s268, %s269
      %p280 = scmp.eq.s32.totalorder %s34, 0
      %p281 = por %p279, %p280
      %p282 = scmp.ne.s32.totalorder %s268, %s269
      %p283 = scmp.eq.s32.totalorder %s35, 3
      %p284 = por %p282, %p283
      %p286 = scmp.ne.s32.totalorder %s269, %s285
      %p287 = scmp.eq.s32.totalorder %s35, 0
      %p288 = por %p286, %p287
      %s289 = ssub.s32 %s37, %s44
      %p290 = scmp.eq.s32.totalorder %s289, 0
      %s292 = sadd.s32 %s291, 1
      %s293 = scalar_select %p290, %s291, %s292
      %p296 = pneg %p290
      %p297 = scmp.eq.s32.totalorder %s29, 3
      %p298 = por %p296, %p297
      %p299 = scmp.ne.s32.totalorder %s291, %s294
      %p300 = scmp.eq.s32.totalorder %s29, 0
      %p301 = por %p299, %p300
      %p302 = scmp.ne.s32.totalorder %s291, %s294
      %p303 = scmp.eq.s32.totalorder %s34, 3
      %p304 = por %p302, %p303
      %p305 = scmp.ne.s32.totalorder %s294, %s295
      %p306 = scmp.eq.s32.totalorder %s34, 0
      %p307 = por %p305, %p306
      %p308 = scmp.ne.s32.totalorder %s294, %s295
      %p309 = scmp.eq.s32.totalorder %s35, 3
      %p310 = por %p308, %p309
      %p312 = scmp.ne.s32.totalorder %s295, %s311
      %p313 = scmp.eq.s32.totalorder %s35, 0
      %p314 = por %p312, %p313
      %s315 = ssub.s32 %s37, %s44
      %p316 = scmp.eq.s32.totalorder %s315, 0
      %s318 = sadd.s32 %s317, 1
      %s319 = scalar_select %p316, %s317, %s318
      %p322 = pneg %p316
      %p323 = scmp.eq.s32.totalorder %s29, 3
      %p324 = por %p322, %p323
      %p325 = scmp.ne.s32.totalorder %s317, %s320
      %p326 = scmp.eq.s32.totalorder %s29, 0
      %p327 = por %p325, %p326
      %p328 = scmp.ne.s32.totalorder %s317, %s320
      %p329 = scmp.eq.s32.totalorder %s34, 3
      %p330 = por %p328, %p329
      %p331 = scmp.ne.s32.totalorder %s320, %s321
      %p332 = scmp.eq.s32.totalorder %s34, 0
      %p333 = por %p331, %p332
      %p334 = scmp.ne.s32.totalorder %s320, %s321
      %p335 = scmp.eq.s32.totalorder %s35, 3
      %p336 = por %p334, %p335
      %p338 = scmp.ne.s32.totalorder %s321, %s337
      %p339 = scmp.eq.s32.totalorder %s35, 0
      %p340 = por %p338, %p339
      %s341 = ssub.s32 %s37, %s44
      %p342 = scmp.eq.s32.totalorder %s341, 0
      %s344 = sadd.s32 %s343, 1
      %s345 = scalar_select %p342, %s343, %s344
      %p348 = pneg %p342
      %p349 = scmp.eq.s32.totalorder %s29, 3
      %p350 = por %p348, %p349
      %p351 = scmp.ne.s32.totalorder %s343, %s346
      %p352 = scmp.eq.s32.totalorder %s29, 0
      %p353 = por %p351, %p352
      %p354 = scmp.ne.s32.totalorder %s343, %s346
      %p355 = scmp.eq.s32.totalorder %s34, 3
      %p356 = por %p354, %p355
      %p357 = scmp.ne.s32.totalorder %s346, %s347
      %p358 = scmp.eq.s32.totalorder %s34, 0
      %p359 = por %p357, %p358
      %p360 = scmp.ne.s32.totalorder %s346, %s347
      %p361 = scmp.eq.s32.totalorder %s35, 3
      %p362 = por %p360, %p361
      %p364 = scmp.ne.s32.totalorder %s347, %s363
      %p365 = scmp.eq.s32.totalorder %s35, 0
      %p366 = por %p364, %p365
      %s367 = ssub.s32 %s37, %s44
      %p368 = scmp.eq.s32.totalorder %s367, 0
      %s370 = sadd.s32 %s369, 1
      %s371 = scalar_select %p368, %s369, %s370
      %p374 = pneg %p368
      %p375 = scmp.eq.s32.totalorder %s29, 3
      %p376 = por %p374, %p375
      %p377 = scmp.ne.s32.totalorder %s369, %s372
      %p378 = scmp.eq.s32.totalorder %s29, 0
      %p379 = por %p377, %p378
      %p380 = scmp.ne.s32.totalorder %s369, %s372
      %p381 = scmp.eq.s32.totalorder %s34, 3
      %p382 = por %p380, %p381
      %p383 = scmp.ne.s32.totalorder %s372, %s373
      %p384 = scmp.eq.s32.totalorder %s34, 0
      %p385 = por %p383, %p384
      %p386 = scmp.ne.s32.totalorder %s372, %s373
      %p387 = scmp.eq.s32.totalorder %s35, 3
      %p388 = por %p386, %p387
      %p390 = scmp.ne.s32.totalorder %s373, %s389
      %p391 = scmp.eq.s32.totalorder %s35, 0
      %p392 = por %p390, %p391
      %s394 = sadd.s32 %s393, 1
      %p397 = scmp.eq.s32.totalorder %s29, 3
      %p398 = scmp.ne.s32.totalorder %s393, %s395
      %p399 = scmp.eq.s32.totalorder %s29, 0
      %p400 = por %p398, %p399
      %p401 = scmp.ne.s32.totalorder %s393, %s395
      %p402 = scmp.eq.s32.totalorder %s34, 3
      %p403 = por %p401, %p402
      %p404 = scmp.ne.s32.totalorder %s395, %s396
      %p405 = scmp.eq.s32.totalorder %s34, 0
      %p406 = por %p404, %p405
      %p407 = scmp.ne.s32.totalorder %s395, %s396
      %p408 = scmp.eq.s32.totalorder %s35, 3
      %p409 = por %p407, %p408
      %p411 = scmp.ne.s32.totalorder %s396, %s410
      %p412 = scmp.eq.s32.totalorder %s35, 0
      %p413 = por %p411, %p412
      %s415 = sadd.s32 %s414, 1
      %p418 = scmp.eq.s32.totalorder %s29, 3
      %p419 = scmp.ne.s32.totalorder %s414, %s416
      %p420 = scmp.eq.s32.totalorder %s29, 0
      %p421 = por %p419, %p420
      %p422 = scmp.ne.s32.totalorder %s414, %s416
      %p423 = scmp.eq.s32.totalorder %s34, 3
      %p424 = por %p422, %p423
      %p425 = scmp.ne.s32.totalorder %s416, %s417
      %p426 = scmp.eq.s32.totalorder %s34, 0
      %p427 = por %p425, %p426
      %p428 = scmp.ne.s32.totalorder %s416, %s417
      %p429 = scmp.eq.s32.totalorder %s35, 3
      %p430 = por %p428, %p429
      %p432 = scmp.ne.s32.totalorder %s417, %s431
      %p433 = scmp.eq.s32.totalorder %s35, 0
      %p434 = por %p432, %p433
      %s436 = sadd.s32 %s435, 1
      %p439 = scmp.eq.s32.totalorder %s29, 3
      %p440 = scmp.ne.s32.totalorder %s435, %s437
      %p441 = scmp.eq.s32.totalorder %s29, 0
      %p442 = por %p440, %p441
      %p443 = scmp.ne.s32.totalorder %s435, %s437
      %p444 = scmp.eq.s32.totalorder %s34, 3
      %p445 = por %p443, %p444
      %p446 = scmp.ne.s32.totalorder %s437, %s438
      %p447 = scmp.eq.s32.totalorder %s34, 0
      %p448 = por %p446, %p447
      %p449 = scmp.ne.s32.totalorder %s437, %s438
      %p450 = scmp.eq.s32.totalorder %s35, 3
      %p451 = por %p449, %p450
      %p453 = scmp.ne.s32.totalorder %s438, %s452
      %p454 = scmp.eq.s32.totalorder %s35, 0
      %p455 = por %p453, %p454
      %s457 = sadd.s32 %s456, 1
      %p460 = scmp.eq.s32.totalorder %s29, 3
      %p461 = scmp.ne.s32.totalorder %s456, %s458
      %p462 = scmp.eq.s32.totalorder %s29, 0
      %p463 = por %p461, %p462
      %p464 = scmp.ne.s32.totalorder %s456, %s458
      %p465 = scmp.eq.s32.totalorder %s34, 3
      %p466 = por %p464, %p465
      %p467 = scmp.ne.s32.totalorder %s458, %s459
      %p468 = scmp.eq.s32.totalorder %s34, 0
      %p469 = por %p467, %p468
      %p470 = scmp.ne.s32.totalorder %s458, %s459
      %p471 = scmp.eq.s32.totalorder %s35, 3
      %p472 = por %p470, %p471
      %p474 = scmp.ne.s32.totalorder %s459, %s473
      %p475 = scmp.eq.s32.totalorder %s35, 0
      %p476 = por %p474, %p475
      %s478 = sadd.s32 %s477, 1
      %p481 = scmp.eq.s32.totalorder %s29, 3
      %p482 = scmp.ne.s32.totalorder %s477, %s479
      %p483 = scmp.eq.s32.totalorder %s29, 0
      %p484 = por %p482, %p483
      %p485 = scmp.ne.s32.totalorder %s477, %s479
      %p486 = scmp.eq.s32.totalorder %s34, 3
      %p487 = por %p485, %p486
      %p488 = scmp.ne.s32.totalorder %s479, %s480
      %p489 = scmp.eq.s32.totalorder %s34, 0
      %p490 = por %p488, %p489
      %p491 = scmp.ne.s32.totalorder %s479, %s480
      %p492 = scmp.eq.s32.totalorder %s35, 3
      %p493 = por %p491, %p492
      %p495 = scmp.ne.s32.totalorder %s480, %s494
      %p496 = scmp.eq.s32.totalorder %s35, 0
      %p497 = por %p495, %p496
      %s499 = sadd.s32 %s498, 1
      %p502 = scmp.eq.s32.totalorder %s29, 3
      %p503 = scmp.ne.s32.totalorder %s498, %s500
      %p504 = scmp.eq.s32.totalorder %s29, 0
      %p505 = por %p503, %p504
      %p506 = scmp.ne.s32.totalorder %s498, %s500
      %p507 = scmp.eq.s32.totalorder %s34, 3
      %p508 = por %p506, %p507
      %p509 = scmp.ne.s32.totalorder %s500, %s501
      %p510 = scmp.eq.s32.totalorder %s34, 0
      %p511 = por %p509, %p510
      %p512 = scmp.ne.s32.totalorder %s500, %s501
      %p513 = scmp.eq.s32.totalorder %s35, 3
      %p514 = por %p512, %p513
      %p516 = scmp.ne.s32.totalorder %s501, %s515
      %p517 = scmp.eq.s32.totalorder %s35, 0
      %p518 = por %p516, %p517
      %s519 = ssub.s32 %s36, %s48
      %p520 = scmp.eq.s32.totalorder %s519, 0
      %s522 = sadd.s32 %s521, 1
      %s523 = scalar_select %p520, %s521, %s522
      %p526 = pneg %p520
      %p527 = scmp.eq.s32.totalorder %s29, 3
      %p528 = por %p526, %p527
      %p529 = scmp.ne.s32.totalorder %s521, %s524
      %p530 = scmp.eq.s32.totalorder %s29, 0
      %p531 = por %p529, %p530
      %p532 = scmp.ne.s32.totalorder %s521, %s524
      %p533 = scmp.eq.s32.totalorder %s34, 3
      %p534 = por %p532, %p533
      %p535 = scmp.ne.s32.totalorder %s524, %s525
      %p536 = scmp.eq.s32.totalorder %s34, 0
      %p537 = por %p535, %p536
      %p538 = scmp.ne.s32.totalorder %s524, %s525
      %p539 = scmp.eq.s32.totalorder %s35, 3
      %p540 = por %p538, %p539
      %p542 = scmp.ne.s32.totalorder %s525, %s541
      %p543 = scmp.eq.s32.totalorder %s35, 0
      %p544 = por %p542, %p543
      %p545 = scmp.le.s32.totalorder 1, %s29
      %p546 = scmp.lt.s32.totalorder %s29, 5
      %p547 = pnand %p545, %p546
      %p548 = pneg %p547
      // Predicated region
      $region9: #{tpu_custom_call.1} parent=5 // pred_check
        _
      $region10: #{tpu_custom_call.1} parent=5 // pred_check_branch
        %550 = sbr.rel (%p547) target = $region12
      $region11: #{tpu_custom_call.1} parent=5 // pred_region
        %s551 = ssub.s32 %s29, 1
        // Predicated region
        $region13: #{tpu_custom_call.1} parent=11 // pred_check
          %p552 = pneg %p88
        $region14: #{tpu_custom_call.1} parent=11 // pred_check_branch
          %554 = sbr.rel (%p552) target = $region16
        $region15: #{tpu_custom_call.1} parent=11 // pred_region
          _
        $region16: #{tpu_custom_call.1} parent=11 // pred_fallthru
          _
        // Predicated region
        $region17: #{tpu_custom_call.1} parent=11 // pred_check
          %p555 = pneg %p109
        $region18: #{tpu_custom_call.1} parent=11 // pred_check_branch
          %557 = sbr.rel (%p555) target = $region20
        $region19: #{tpu_custom_call.1} parent=11 // pred_region
          _
        $region20: #{tpu_custom_call.1} parent=11 // pred_fallthru
          _
        // Predicated region
        $region21: #{tpu_custom_call.1} parent=11 // pred_check
          %p558 = pneg %p130
        $region22: #{tpu_custom_call.1} parent=11 // pred_check_branch
          %560 = sbr.rel (%p558) target = $region24
        $region23: #{tpu_custom_call.1} parent=11 // pred_region
          _
        $region24: #{tpu_custom_call.1} parent=11 // pred_fallthru
          _
        // Predicated region
        $region25: #{tpu_custom_call.1} parent=11 // pred_check
          %p561 = pneg %p151
        $region26: #{tpu_custom_call.1} parent=11 // pred_check_branch
          %563 = sbr.rel (%p561) target = $region28
        $region27: #{tpu_custom_call.1} parent=11 // pred_region
          _
        $region28: #{tpu_custom_call.1} parent=11 // pred_fallthru
          _
        // Predicated region
        $region29: #{tpu_custom_call.1} parent=11 // pred_check
          %p564 = pneg %p406
        $region30: #{tpu_custom_call.1} parent=11 // pred_check_branch
          %566 = sbr.rel (%p564) target = $region32
        $region31: #{tpu_custom_call.1} parent=11 // pred_region
          _
        $region32: #{tpu_custom_call.1} parent=11 // pred_fallthru
          _
        // Predicated region
        $region33: #{tpu_custom_call.1} parent=11 // pred_check
          %p567 = pneg %p427
        $region34: #{tpu_custom_call.1} parent=11 // pred_check_branch
          %569 = sbr.rel (%p567) target = $region36
        $region35: #{tpu_custom_call.1} parent=11 // pred_region
          _
        $region36: #{tpu_custom_call.1} parent=11 // pred_fallthru
          _
        // Predicated region
        $region37: #{tpu_custom_call.1} parent=11 // pred_check
          %p570 = pneg %p448
        $region38: #{tpu_custom_call.1} parent=11 // pred_check_branch
          %572 = sbr.rel (%p570) target = $region40
        $region39: #{tpu_custom_call.1} parent=11 // pred_region
          _
        $region40: #{tpu_custom_call.1} parent=11 // pred_fallthru
          _
        // Predicated region
        $region41: #{tpu_custom_call.1} parent=11 // pred_check
          %p573 = pneg %p469
        $region42: #{tpu_custom_call.1} parent=11 // pred_check_branch
          %575 = sbr.rel (%p573) target = $region44
        $region43: #{tpu_custom_call.1} parent=11 // pred_region
          _
        $region44: #{tpu_custom_call.1} parent=11 // pred_fallthru
          _
        // Predicated region
        $region45: #{tpu_custom_call.1} parent=11 // pred_check
          %p576 = pneg %p490
        $region46: #{tpu_custom_call.1} parent=11 // pred_check_branch
          %578 = sbr.rel (%p576) target = $region48
        $region47: #{tpu_custom_call.1} parent=11 // pred_region
          _
        $region48: #{tpu_custom_call.1} parent=11 // pred_fallthru
          _
        // Predicated region
        $region49: #{tpu_custom_call.1} parent=11 // pred_check
          %p579 = pneg %p511
        $region50: #{tpu_custom_call.1} parent=11 // pred_check_branch
          %581 = sbr.rel (%p579) target = $region52
        $region51: #{tpu_custom_call.1} parent=11 // pred_region
          _
        $region52: #{tpu_custom_call.1} parent=11 // pred_fallthru
          _
      $region12: #{tpu_custom_call.1} parent=5 // pred_fallthru
        _
      %p582 = scmp.lt.s32.totalorder %s29, 4
      // Predicated region
      $region53: #{tpu_custom_call.1} parent=5 // pred_check
        %p583 = pneg %p582
      $region54: #{tpu_custom_call.1} parent=5 // pred_check_branch
        %585 = sbr.rel (%p583) target = $region56
      $region55: #{tpu_custom_call.1} parent=5 // pred_region
        // Predicated region
        $region57: #{tpu_custom_call.1} parent=55 // pred_check
          %p586 = pneg %p61
        $region58: #{tpu_custom_call.1} parent=55 // pred_check_branch
          %588 = sbr.rel (%p586) target = $region60
        $region59: #{tpu_custom_call.1} parent=55 // pred_region
          %p589 = scmp.lt.s32.totalorder %s36, 1
          %s590 = scalar_select %p589, %s36, 1
          %s591 = smul.addr %s590, 2
          %s592 = smul.addr %s591, 8
          %s593 = scalar_lea.vmem %s0, %s592
        $region60: #{tpu_custom_call.1} parent=55 // pred_fallthru
          _
        // Predicated region
        $region61: #{tpu_custom_call.1} parent=55 // pred_check
          %p594 = pneg %p171
        $region62: #{tpu_custom_call.1} parent=55 // pred_check_branch
          %596 = sbr.rel (%p594) target = $region64
        $region63: #{tpu_custom_call.1} parent=55 // pred_region
          %p597 = scmp.lt.s32.totalorder %s37, 1
          %s598 = scalar_select %p597, %s37, 1
          %s599 = smul.addr %s598, 4
          %s600 = scalar_lea.vmem %s5, %s599
        $region64: #{tpu_custom_call.1} parent=55 // pred_fallthru
          _
        // Predicated region
        $region65: #{tpu_custom_call.1} parent=55 // pred_check
          %p601 = pneg %p197
        $region66: #{tpu_custom_call.1} parent=55 // pred_check_branch
          %603 = sbr.rel (%p601) target = $region68
        $region67: #{tpu_custom_call.1} parent=55 // pred_region
          %p604 = scmp.lt.s32.totalorder %s37, 1
          %s605 = scalar_select %p604, %s37, 1
          %s606 = smul.addr %s605, 4
          %s607 = smul.addr %s606, 4
          %s608 = scalar_lea.vmem %s6, %s607
        $region68: #{tpu_custom_call.1} parent=55 // pred_fallthru
          _
        // Predicated region
        $region69: #{tpu_custom_call.1} parent=55 // pred_check
          %p609 = pneg %p223
        $region70: #{tpu_custom_call.1} parent=55 // pred_check_branch
          %611 = sbr.rel (%p609) target = $region72
        $region71: #{tpu_custom_call.1} parent=55 // pred_region
          %p612 = scmp.lt.s32.totalorder %s37, 1
          %s613 = scalar_select %p612, %s37, 1
          %s614 = scalar_lea.vmem %s7, %s613
        $region72: #{tpu_custom_call.1} parent=55 // pred_fallthru
          _
        // Predicated region
        $region73: #{tpu_custom_call.1} parent=55 // pred_check
          %p615 = pneg %p249
        $region74: #{tpu_custom_call.1} parent=55 // pred_check_branch
          %617 = sbr.rel (%p615) target = $region76
        $region75: #{tpu_custom_call.1} parent=55 // pred_region
          %p618 = scmp.lt.s32.totalorder %s37, 1
          %s619 = scalar_select %p618, %s37, 1
          %s620 = smul.addr %s619, 4
          %s621 = smul.addr %s620, 4
          %s622 = scalar_lea.vmem %s8, %s621
        $region76: #{tpu_custom_call.1} parent=55 // pred_fallthru
          _
        // Predicated region
        $region77: #{tpu_custom_call.1} parent=55 // pred_check
          %p623 = pneg %p275
        $region78: #{tpu_custom_call.1} parent=55 // pred_check_branch
          %625 = sbr.rel (%p623) target = $region80
        $region79: #{tpu_custom_call.1} parent=55 // pred_region
          %p626 = scmp.lt.s32.totalorder %s37, 1
          %s627 = scalar_select %p626, %s37, 1
          %s628 = scalar_lea.vmem %s9, %s627
        $region80: #{tpu_custom_call.1} parent=55 // pred_fallthru
          _
        // Predicated region
        $region81: #{tpu_custom_call.1} parent=55 // pred_check
          %p629 = pneg %p301
        $region82: #{tpu_custom_call.1} parent=55 // pred_check_branch
          %631 = sbr.rel (%p629) target = $region84
        $region83: #{tpu_custom_call.1} parent=55 // pred_region
          %p632 = scmp.lt.s32.totalorder %s37, 1
          %s633 = scalar_select %p632, %s37, 1
          %s634 = smul.addr %s633, 4
          %s635 = smul.addr %s634, 4
          %s636 = scalar_lea.vmem %s10, %s635
        $region84: #{tpu_custom_call.1} parent=55 // pred_fallthru
          _
        // Predicated region
        $region85: #{tpu_custom_call.1} parent=55 // pred_check
          %p637 = pneg %p327
        $region86: #{tpu_custom_call.1} parent=55 // pred_check_branch
          %639 = sbr.rel (%p637) target = $region88
        $region87: #{tpu_custom_call.1} parent=55 // pred_region
          %p640 = scmp.lt.s32.totalorder %s37, 1
          %s641 = scalar_select %p640, %s37, 1
          %s642 = scalar_lea.vmem %s11, %s641
        $region88: #{tpu_custom_call.1} parent=55 // pred_fallthru
          _
        // Predicated region
        $region89: #{tpu_custom_call.1} parent=55 // pred_check
          %p643 = pneg %p353
        $region90: #{tpu_custom_call.1} parent=55 // pred_check_branch
          %645 = sbr.rel (%p643) target = $region92
        $region91: #{tpu_custom_call.1} parent=55 // pred_region
          %p646 = scmp.lt.s32.totalorder %s37, 1
          %s647 = scalar_select %p646, %s37, 1
          %s648 = smul.addr %s647, 16
          %s649 = smul.addr %s648, 4
          %s650 = scalar_lea.vmem %s12, %s649
        $region92: #{tpu_custom_call.1} parent=55 // pred_fallthru
          _
        // Predicated region
        $region93: #{tpu_custom_call.1} parent=55 // pred_check
          %p651 = pneg %p379
        $region94: #{tpu_custom_call.1} parent=55 // pred_check_branch
          %653 = sbr.rel (%p651) target = $region96
        $region95: #{tpu_custom_call.1} parent=55 // pred_region
          %p654 = scmp.lt.s32.totalorder %s37, 1
          %s655 = scalar_select %p654, %s37, 1
          %s656 = scalar_lea.vmem %s13, %s655
        $region96: #{tpu_custom_call.1} parent=55 // pred_fallthru
          _
      $region56: #{tpu_custom_call.1} parent=5 // pred_fallthru
        _
      %p657 = scmp.le.s32.totalorder 1, %s29
      %p658 = scmp.lt.s32.totalorder %s29, 5
      %p659 = pnand %p657, %p658
      %p660 = pneg %p659
      // Predicated region
      $region97: #{tpu_custom_call.1} parent=5 // pred_check
        _
      $region98: #{tpu_custom_call.1} parent=5 // pred_check_branch
        %662 = sbr.rel (%p659) target = $region100
      $region99: #{tpu_custom_call.1} parent=5 // pred_region
        %s663 = ssub.s32 %s29, 1
        %p664 = scmp.lt.s32.totalorder %s38, 1
        %s665 = scalar_select %p664, %s38, 1
        %s666 = smul.addr %s665, 2
        %s667 = smul.addr %s666, 8
        %s668 = scalar_lea.vmem %s0, %s667
        %p669 = pneg %p67
        %p670 = pneg %p64
        %p671 = pneg %p88
        %p672 = pneg %p85
        %p673 = pneg %p109
        %p674 = pneg %p106
        %p675 = pneg %p130
        %p676 = pneg %p127
        %p677 = pneg %p151
        %p678 = pneg %p148
        %p679 = scmp.lt.s32.totalorder %s39, 1
        %s680 = scalar_select %p679, %s39, 1
        %s681 = smul.addr %s680, 4
        %s682 = scalar_lea.vmem %s5, %s681
        %p683 = pneg %p177
        %p684 = pneg %p174
        %p685 = scmp.lt.s32.totalorder %s39, 1
        %s686 = scalar_select %p685, %s39, 1
        %s687 = smul.addr %s686, 4
        %s688 = smul.addr %s687, 4
        %s689 = scalar_lea.vmem %s6, %s688
        %p690 = pneg %p203
        %p691 = pneg %p200
        %p692 = scmp.lt.s32.totalorder %s39, 1
        %s693 = scalar_select %p692, %s39, 1
        %s694 = scalar_lea.vmem %s7, %s693
        %p695 = pneg %p229
        %p696 = pneg %p226
        %p697 = scmp.lt.s32.totalorder %s39, 1
        %s698 = scalar_select %p697, %s39, 1
        %s699 = smul.addr %s698, 4
        %s700 = smul.addr %s699, 4
        %s701 = scalar_lea.vmem %s8, %s700
        %p702 = pneg %p255
        %p703 = pneg %p252
        %p704 = scmp.lt.s32.totalorder %s39, 1
        %s705 = scalar_select %p704, %s39, 1
        %s706 = scalar_lea.vmem %s9, %s705
        %p707 = pneg %p281
        %p708 = pneg %p278
        %p709 = scmp.lt.s32.totalorder %s39, 1
        %s710 = scalar_select %p709, %s39, 1
        %s711 = smul.addr %s710, 4
        %s712 = smul.addr %s711, 4
        %s713 = scalar_lea.vmem %s10, %s712
        %p714 = pneg %p307
        %p715 = pneg %p304
        %p716 = scmp.lt.s32.totalorder %s39, 1
        %s717 = scalar_select %p716, %s39, 1
        %s718 = scalar_lea.vmem %s11, %s717
        %p719 = pneg %p333
        %p720 = pneg %p330
        %p721 = scmp.lt.s32.totalorder %s39, 1
        %s722 = scalar_select %p721, %s39, 1
        %s723 = smul.addr %s722, 16
        %s724 = smul.addr %s723, 4
        %s725 = scalar_lea.vmem %s12, %s724
        %p726 = pneg %p359
        %p727 = pneg %p356
        %p728 = scmp.lt.s32.totalorder %s39, 1
        %s729 = scalar_select %p728, %s39, 1
        %s730 = scalar_lea.vmem %s13, %s729
        %p731 = pneg %p385
        %p732 = pneg %p382
        %p733 = pneg %p406
        %p734 = pneg %p403
        %p735 = pneg %p427
        %p736 = pneg %p424
        %p737 = pneg %p448
        %p738 = pneg %p445
        %p739 = pneg %p469
        %p740 = pneg %p466
        %p741 = pneg %p490
        %p742 = pneg %p487
        %p743 = pneg %p511
        %p744 = pneg %p508
        %p745 = pneg %p537
        %p746 = pneg %p534
        %s747 = sand.u32 %s524, 1
        %s748 = scalar_lea.sflag [#allocation4], %s747
        %s749 = sand.u32 %s524, 1
        %s750 = scalar_lea.vmem [#allocation3], %s749
        %p751 = scmp.lt.s32.totalorder %s38, 1
        %s752 = scalar_select %p751, %s38, 1
        %s753 = smul.addr %s752, 2
        %s754 = smul.addr %s753, 8
        %s755 = scalar_lea.vmem %s0, %s754
        %p756 = scmp.lt.s32.totalorder %s39, 1
        %s757 = scalar_select %p756, %s39, 1
        %s758 = smul.addr %s757, 4
        %s759 = scalar_lea.vmem %s5, %s758
        %p760 = scmp.lt.s32.totalorder %s39, 1
        %s761 = scalar_select %p760, %s39, 1
        %s762 = smul.addr %s761, 4
        %s763 = smul.addr %s762, 4
        %s764 = scalar_lea.vmem %s6, %s763
        %p765 = scmp.lt.s32.totalorder %s39, 1
        %s766 = scalar_select %p765, %s39, 1
        %s767 = scalar_lea.vmem %s7, %s766
        %p768 = scmp.lt.s32.totalorder %s39, 1
        %s769 = scalar_select %p768, %s39, 1
        %s770 = smul.addr %s769, 4
        %s771 = smul.addr %s770, 4
        %s772 = scalar_lea.vmem %s8, %s771
        %p773 = scmp.lt.s32.totalorder %s39, 1
        %s774 = scalar_select %p773, %s39, 1
        %s775 = scalar_lea.vmem %s9, %s774
        %p776 = scmp.lt.s32.totalorder %s39, 1
        %s777 = scalar_select %p776, %s39, 1
        %s778 = smul.addr %s777, 4
        %s779 = smul.addr %s778, 4
        %s780 = scalar_lea.vmem %s10, %s779
        %p781 = scmp.lt.s32.totalorder %s39, 1
        %s782 = scalar_select %p781, %s39, 1
        %s783 = scalar_lea.vmem %s11, %s782
        %p784 = scmp.lt.s32.totalorder %s39, 1
        %s785 = scalar_select %p784, %s39, 1
        %s786 = smul.addr %s785, 16
        %s787 = smul.addr %s786, 4
        %s788 = scalar_lea.vmem %s12, %s787
        %p789 = scmp.lt.s32.totalorder %s39, 1
        %s790 = scalar_select %p789, %s39, 1
        %s791 = scalar_lea.vmem %s13, %s790
        %p793 = scmp.eq.s32.totalorder %s39, 0
        // Predicated region
        $region101: #{tpu_custom_call.1} parent=99 // pred_check
          %p794 = pneg %p793
        $region102: #{tpu_custom_call.1} parent=99 // pred_check_branch
          %796 = sbr.rel (%p794) target = $region104
        $region103: #{tpu_custom_call.1} parent=99 // pred_region
          %v797 = vld [vmem:[%s755] sm:$0xff]
          %v798 = vld [vmem:[%s755 + $0x8] sm:$0xff]
          %v799 = vpack.c.bf16 %v798, %v797
          %v800 = vld [vmem:[%s1] sm:$0xf]
          %v801 = vld [vmem:[%s1 + $0x4] sm:$0xf]
          %v802 = vld [vmem:[%s1 + $0x8] sm:$0xf]
          %v803 = vld [vmem:[%s1 + $0xc] sm:$0xf]
          %v804 = vld [vmem:[%s1 + $0x10] sm:$0xf]
          %v805 = vld [vmem:[%s1 + $0x14] sm:$0xf]
          %v806 = vld [vmem:[%s1 + $0x18] sm:$0xf]
          %v807 = vld [vmem:[%s1 + $0x1c] sm:$0xf]
          %v808 = vld [vmem:[%s2] sm:$0x1]
          %v810 = vperm.slane %v808, 0
          %v820 = vunpack.c.l.b16 %v800
          %v821 = vunpack.c.l.b16 %v801
          %v822 = vunpack.c.l.b16 %v802
          %v823 = vunpack.c.l.b16 %v803
          %v824 = vunpack.c.l.b16 %v804
          %v825 = vunpack.c.l.b16 %v805
          %v826 = vunpack.c.l.b16 %v806
          %v827 = vunpack.c.l.b16 %v807
          %v828 = vpack.c.b16 %v821, %v820
          %v829 = vpack.c.b16 %v823, %v822
          %v830 = vpack.c.b16 %v825, %v824
          %v831 = vpack.c.b16 %v827, %v826
          %vm836 = vcmask 523264
          %v838 = vsel %vm836, %v799, 0
          %840 = vmatpush.bf16.msra.mxu0 0
          %841 = vmatpush.bf16.msra.mxu0 0
          %842 = vmatpush.bf16.msra.mxu0 0
          %843 = vmatpush.bf16.msra.mxu0 0
          %844 = vmatpush.bf16.msra.mxu0 %v831
          %845 = vmatpush.bf16.msra.mxu0 %v830
          %846 = vmatpush.bf16.msra.mxu0 %v829
          %847 = vmatpush.bf16.msra.mxu0 %v828
          %848 = vmatmul.bf16.gmra.mxu0 %v838
          %v849 = vpop.f32.mrf.mxu0
          %v850 = vadd.f32 %v810, %v849
          %v851 = vpop.f32.mrf.mxu0
          %v852 = vadd.f32 %v810, %v851
          %853 = vdwg.mxu0
          %v854 = vld [vmem:[%s4] sm:$0xff]
          %v855 = vld [vmem:[%s4 + $0x8] sm:$0xff]
          %v856 = vadd.f32 %v850, %v854
          %v857 = vadd.f32 %v852, %v855
          %vm858 = vcmask 261120
          %859 = vst.msk [vmem:[#allocation2] sm:$0xff] %vm858, %v856
          %860 = vst.msk [vmem:[#allocation2 + $0x8] sm:$0xff] %vm858, %v857
          %v861 = vld [vmem:[%s3] sm:$0x1]
          %v862 = vld [vmem:[%s4 + $0x10] sm:$0x1]
          %v863 = vadd.f32 %v861, %v862
          %vm864 = vcmask 253952
          %865 = vst.msk [vmem:[#allocation2 + $0x10] sm:$0x1] %vm864, %v863
        $region104: #{tpu_custom_call.1} parent=99 // pred_fallthru
          _
        %v866 = vld [vmem:[#allocation2] sm:$0xff]
        %v867 = vld [vmem:[#allocation2 + $0x8] sm:$0xff]
        %v868 = vld [vmem:[#allocation2 + $0x10] sm:$0x1]
        %v869 = vld [vmem:[%s759] sm:$0xf]
        %vm870 = vcmask 261120
        %v871 = vsel %vm870, %v866, 0.0
        %872 = vadd.xlane.f32.xlu0 %v871
        %v873 = vpop.xlane.xlu0 %872
        %v874 = vsel %vm870, %v867, 0.0
        %875 = vadd.xlane.f32.xlu0 %v874
        %v876 = vpop.xlane.xlu0 %875
        %vm877 = vcmask 253952
        %v878 = vsel %vm877, %v868, 0.0
        %879 = vadd.xlane.f32.xlu0 %v878
        %v880 = vpop.xlane.xlu0 %879
        %v881 = vrcp.pop 32.0
        %v882 = vmul.f32 32.0, %v881
        %v883 = vsub.f32 1.0, %v882
        %v884 = vmul.f32 %v881, %v883
        %v885 = vadd.f32 %v881, %v884
        %vm886 = vweird.f32 %v881
        %v887 = vsel %vm886, %v881, %v885
        %v888 = vmul.f32 %v873, %v887
        %v889 = vmul.f32 %v876, %v887
        %v890 = vmul.f32 %v880, %v887
        %v891 = vsub.f32 %v866, %v888
        %v892 = vsub.f32 %v867, %v889
        %v893 = vsub.f32 %v868, %v890
        %v894 = vmul.f32 %v891, %v891
        %v895 = vmul.f32 %v892, %v892
        %v896 = vmul.f32 %v893, %v893
        %v897 = vsel %vm870, %v894, 0.0
        %898 = vadd.xlane.f32.xlu0 %v897
        %v899 = vpop.xlane.xlu0 %898
        %v900 = vsel %vm870, %v895, 0.0
        %901 = vadd.xlane.f32.xlu0 %v900
        %v902 = vpop.xlane.xlu0 %901
        %v903 = vsel %vm877, %v896, 0.0
        %904 = vadd.xlane.f32.xlu0 %v903
        %v905 = vpop.xlane.xlu0 %904
        %v906 = vmul.f32 %v899, %v887
        %v907 = vmul.f32 %v902, %v887
        %v908 = vmul.f32 %v905, %v887
        %v909 = vadd.f32 %v906, 1e-05
        %v910 = vadd.f32 %v907, 1e-05
        %v911 = vadd.f32 %v908, 1e-05
        %v912 = vrsqrt.pop %v909
        %v913 = vmul.f32 %v912, %v909
        %v914 = vmul.f32 %v913, %v912
        %v915 = vmul.f32 0.5, %v914
        %v916 = vsub.f32 1.5, %v915
        %v917 = vmul.f32 %v912, %v916
        %vm918 = vweird.f32 %v909
        %vm919 = vweird.f32 %v912
        %vm920 = vmor %vm918, %vm919
        %v921 = vsel %vm920, %v912, %v917
        %v922 = vrsqrt.pop %v910
        %v923 = vmul.f32 %v922, %v910
        %v924 = vmul.f32 %v923, %v922
        %v925 = vmul.f32 0.5, %v924
        %v926 = vsub.f32 1.5, %v925
        %v927 = vmul.f32 %v922, %v926
        %vm928 = vweird.f32 %v910
        %vm929 = vweird.f32 %v922
        %vm930 = vmor %vm928, %vm929
        %v931 = vsel %vm930, %v922, %v927
        %v932 = vrsqrt.pop %v911
        %v933 = vmul.f32 %v932, %v911
        %v934 = vmul.f32 %v933, %v932
        %v935 = vmul.f32 0.5, %v934
        %v936 = vsub.f32 1.5, %v935
        %v937 = vmul.f32 %v932, %v936
        %vm938 = vweird.f32 %v911
        %vm939 = vweird.f32 %v932
        %vm940 = vmor %vm938, %vm939
        %v941 = vsel %vm940, %v932, %v937
        %v942 = vmul.f32 %v891, %v921
        %v943 = vmul.f32 %v892, %v931
        %v944 = vmul.f32 %v893, %v941
        %v945 = vperm.slane %v869, 0
        %v946 = vmul.f32 %v942, %v945
        %v947 = vmul.f32 %v943, %v945
        %v948 = vmul.f32 %v944, %v945
        %v949 = vperm.slane %v869, 1
        %v950 = vadd.f32 %v946, %v949
        %v951 = vadd.f32 %v947, %v949
        %v952 = vadd.f32 %v948, %v949
        %v953 = vpack.c.bf16 %v951, %v950
        %v954 = vpack.c.bf16 %v952, %v952
        %v955 = vld [vmem:[%s764] sm:$0xf]
        %v956 = vld [vmem:[%s764 + $0x4] sm:$0xf]
        %v957 = vld [vmem:[%s764 + $0x8] sm:$0xf]
        %v958 = vld [vmem:[%s764 + $0xc] sm:$0xf]
        %v959 = vld [vmem:[%s767] sm:$0x1]
        %v961 = vperm.slane %v959, 0
        %v967 = vunpack.c.l.b16 %v955
        %v968 = vunpack.c.l.b16 %v956
        %v969 = vunpack.c.l.b16 %v957
        %v970 = vunpack.c.l.b16 %v958
        %v971 = vpack.c.b16 %v968, %v967
        %v972 = vpack.c.b16 %v970, %v969
        %v976 = vsel %vm870, %v953, 0
        %v979 = vsel %vm870, %v954, 0
        %981 = vmatpush.bf16.msra.mxu0 0
        %982 = vmatpush.bf16.msra.mxu0 0
        %983 = vmatpush.bf16.msra.mxu0 0
        %984 = vmatpush.bf16.msra.mxu0 0
        %985 = vmatpush.bf16.msra.mxu0 0
        %986 = vmatpush.bf16.msra.mxu0 0
        %987 = vmatpush.bf16.msra.mxu0 %v972
        %988 = vmatpush.bf16.msra.mxu0 %v971
        %989 = vmatmul.bf16.gmra.mxu0 %v976
        %v990 = vpop.f32.mrf.mxu0
        %v991 = vadd.f32 %v961, %v990
        %v992 = vpop.f32.mrf.mxu0
        %v993 = vadd.f32 %v961, %v992
        %994 = vmatmul.bf16.gmra.mxu0 %v979
        %v995 = vpop.f32.mrf.mxu0
        %v996 = vadd.f32 %v961, %v995
        %v997 = vpop.f32.mrf.mxu0
        %998 = vdwg.mxu0
        %1002 = vrot.lane.b32.xlu0 %v991, 120
        %v1003 = vpop.permute.xlu0 %1002
        %1004 = vrot.lane.b32.xlu0 %v993, 120
        %v1005 = vpop.permute.xlu0 %1004
        %1006 = vrot.lane.b32.xlu0 %v996, 120
        %v1007 = vpop.permute.xlu0 %1006
        %1011 = vrot.lane.b32.xlu0 %v991, 112
        %v1012 = vpop.permute.xlu0 %1011
        %1013 = vrot.lane.b32.xlu0 %v993, 112
        %v1014 = vpop.permute.xlu0 %1013
        %1015 = vrot.lane.b32.xlu0 %v996, 112
        %v1016 = vpop.permute.xlu0 %1015
        %1020 = vrot.lane.b32.xlu0 %v991, 104
        %v1021 = vpop.permute.xlu0 %1020
        %1022 = vrot.lane.b32.xlu0 %v993, 104
        %v1023 = vpop.permute.xlu0 %1022
        %1024 = vrot.lane.b32.xlu0 %v996, 104
        %v1025 = vpop.permute.xlu0 %1024
        %v1029 = vpack.c.bf16 %v991, %v991
        %v1030 = vpack.c.bf16 %v993, %v993
        %v1031 = vpack.c.bf16 %v996, %v996
        %v1032 = vpack.c.bf16 %v1003, %v1003
        %v1033 = vpack.c.bf16 %v1005, %v1005
        %v1034 = vpack.c.bf16 %v1007, %v1007
        %v1035 = vpack.c.bf16 %v1012, %v1012
        %v1036 = vpack.c.bf16 %v1014, %v1014
        %v1037 = vpack.c.bf16 %v1016, %v1016
        %v1038 = vpack.c.bf16 %v1021, %v1021
        %v1039 = vpack.c.bf16 %v1023, %v1023
        %v1040 = vpack.c.bf16 %v1025, %v1025
        %v1044 = vunpack.c.l.b16 %v1029
        %v1045 = vunpack.c.l.b16 %v1030
        %v1046 = vunpack.c.l.b16 %v1031
        %v1047 = vpack.c.b16 %v1045, %v1044
        %v1048 = vpack.c.b16 %v1046, %v1046
        %1049 = vrot.lane.b32.xlu0 %v1047, 96
        %v1050 = vpop.permute.xlu0 %1049
        %1051 = vrot.lane.b32.xlu0 %v1048, 96
        %v1052 = vpop.permute.xlu0 %1051
        %vm1053 = vcmask 64512
        %v1055 = vsel %vm1053, %v1047, 0
        %v1058 = vsel %vm1053, %v1048, 0
        %v1061 = vsel %vm1053, %v1050, 0
        %v1064 = vsel %vm1053, %v1052, 0
        %1066 = vmatpush.bf16.xpose.msra.mxu0 0
        %1067 = vmatpush.bf16.xpose.msra.mxu0 0
        %1068 = vmatpush.bf16.xpose.msra.mxu0 0
        %1069 = vmatpush.bf16.xpose.msra.mxu0 0
        %1070 = vmatpush.bf16.xpose.msra.mxu0 0
        %1071 = vmatpush.bf16.xpose.msra.mxu0 0
        %1072 = vmatpush.bf16.xpose.msra.mxu0 %v1064
        %1073 = vmatpush.bf16.xpose.msra.mxu0 %v1061
        %1074 = vmatmul.bf16.gmra.mxu0 %v1055
        %v1075 = vpop.f32.mrf.mxu0
        %v1076 = vadd.f32 0.0, %v1075
        %v1077 = vpop.f32.mrf.mxu0
        %v1078 = vadd.f32 0.0, %v1077
        %1079 = vmatmul.bf16.gmra.mxu0 %v1058
        %v1080 = vpop.f32.mrf.mxu0
        %v1081 = vadd.f32 0.0, %v1080
        %v1082 = vpop.f32.mrf.mxu0
        %1083 = vdwg.mxu0
        %v1087 = vunpack.c.l.b16 %v1032
        %v1088 = vunpack.c.l.b16 %v1033
        %v1089 = vunpack.c.l.b16 %v1034
        %v1090 = vpack.c.b16 %v1088, %v1087
        %v1091 = vpack.c.b16 %v1089, %v1089
        %1092 = vrot.lane.b32.xlu0 %v1090, 96
        %v1093 = vpop.permute.xlu0 %1092
        %1094 = vrot.lane.b32.xlu0 %v1091, 96
        %v1095 = vpop.permute.xlu0 %1094
        %v1097 = vsel %vm1053, %v1090, 0
        %v1100 = vsel %vm1053, %v1091, 0
        %v1103 = vsel %vm1053, %v1093, 0
        %v1106 = vsel %vm1053, %v1095, 0
        %1108 = vmatpush.bf16.xpose.msra.mxu0 0
        %1109 = vmatpush.bf16.xpose.msra.mxu0 0
        %1110 = vmatpush.bf16.xpose.msra.mxu0 0
        %1111 = vmatpush.bf16.xpose.msra.mxu0 0
        %1112 = vmatpush.bf16.xpose.msra.mxu0 0
        %1113 = vmatpush.bf16.xpose.msra.mxu0 0
        %1114 = vmatpush.bf16.xpose.msra.mxu0 %v1106
        %1115 = vmatpush.bf16.xpose.msra.mxu0 %v1103
        %1116 = vmatmul.bf16.gmra.mxu0 %v1097
        %v1117 = vpop.f32.mrf.mxu0
        %v1118 = vadd.f32 0.0, %v1117
        %v1119 = vpop.f32.mrf.mxu0
        %v1120 = vadd.f32 0.0, %v1119
        %1121 = vmatmul.bf16.gmra.mxu0 %v1100
        %v1122 = vpop.f32.mrf.mxu0
        %v1123 = vadd.f32 0.0, %v1122
        %v1124 = vpop.f32.mrf.mxu0
        %1125 = vdwg.mxu0
        %v1129 = vunpack.c.l.b16 %v1035
        %v1130 = vunpack.c.l.b16 %v1036
        %v1131 = vunpack.c.l.b16 %v1037
        %v1132 = vpack.c.b16 %v1130, %v1129
        %v1133 = vpack.c.b16 %v1131, %v1131
        %1134 = vrot.lane.b32.xlu0 %v1132, 96
        %v1135 = vpop.permute.xlu0 %1134
        %1136 = vrot.lane.b32.xlu0 %v1133, 96
        %v1137 = vpop.permute.xlu0 %1136
        %v1139 = vsel %vm1053, %v1132, 0
        %v1142 = vsel %vm1053, %v1133, 0
        %v1145 = vsel %vm1053, %v1135, 0
        %v1148 = vsel %vm1053, %v1137, 0
        %1150 = vmatpush.bf16.xpose.msra.mxu0 0
        %1151 = vmatpush.bf16.xpose.msra.mxu0 0
        %1152 = vmatpush.bf16.xpose.msra.mxu0 0
        %1153 = vmatpush.bf16.xpose.msra.mxu0 0
        %1154 = vmatpush.bf16.xpose.msra.mxu0 0
        %1155 = vmatpush.bf16.xpose.msra.mxu0 0
        %1156 = vmatpush.bf16.xpose.msra.mxu0 %v1148
        %1157 = vmatpush.bf16.xpose.msra.mxu0 %v1145
        %1158 = vmatmul.bf16.gmra.mxu0 %v1139
        %v1159 = vpop.f32.mrf.mxu0
        %v1160 = vadd.f32 0.0, %v1159
        %v1161 = vpop.f32.mrf.mxu0
        %v1162 = vadd.f32 0.0, %v1161
        %1163 = vmatmul.bf16.gmra.mxu0 %v1142
        %v1164 = vpop.f32.mrf.mxu0
        %v1165 = vadd.f32 0.0, %v1164
        %v1166 = vpop.f32.mrf.mxu0
        %1167 = vdwg.mxu0
        %v1171 = vunpack.c.l.b16 %v1038
        %v1172 = vunpack.c.l.b16 %v1039
        %v1173 = vunpack.c.l.b16 %v1040
        %v1174 = vpack.c.b16 %v1172, %v1171
        %v1175 = vpack.c.b16 %v1173, %v1173
        %1176 = vrot.lane.b32.xlu0 %v1174, 96
        %v1177 = vpop.permute.xlu0 %1176
        %1178 = vrot.lane.b32.xlu0 %v1175, 96
        %v1179 = vpop.permute.xlu0 %1178
        %v1181 = vsel %vm1053, %v1174, 0
        %v1184 = vsel %vm1053, %v1175, 0
        %v1187 = vsel %vm1053, %v1177, 0
        %v1190 = vsel %vm1053, %v1179, 0
        %1192 = vmatpush.bf16.xpose.msra.mxu0 0
        %1193 = vmatpush.bf16.xpose.msra.mxu0 0
        %1194 = vmatpush.bf16.xpose.msra.mxu0 0
        %1195 = vmatpush.bf16.xpose.msra.mxu0 0
        %1196 = vmatpush.bf16.xpose.msra.mxu0 0
        %1197 = vmatpush.bf16.xpose.msra.mxu0 0
        %1198 = vmatpush.bf16.xpose.msra.mxu0 %v1190
        %1199 = vmatpush.bf16.xpose.msra.mxu0 %v1187
        %1200 = vmatmul.bf16.gmra.mxu0 %v1181
        %v1201 = vpop.f32.mrf.mxu0
        %v1202 = vadd.f32 0.0, %v1201
        %v1203 = vpop.f32.mrf.mxu0
        %v1204 = vadd.f32 0.0, %v1203
        %1205 = vmatmul.bf16.gmra.mxu0 %v1184
        %v1206 = vpop.f32.mrf.mxu0
        %v1207 = vadd.f32 0.0, %v1206
        %v1208 = vpop.f32.mrf.mxu0
        %1209 = vdwg.mxu0
        %v1210 = vmul.f32 %v1076, 0.35355338
        %v1211 = vmul.f32 %v1078, 0.35355338
        %v1212 = vmul.f32 %v1081, 0.35355338
        %v1213 = vmul.f32 %v1118, 0.35355338
        %v1214 = vmul.f32 %v1120, 0.35355338
        %v1215 = vmul.f32 %v1123, 0.35355338
        %v1216 = vmul.f32 %v1160, 0.35355338
        %v1217 = vmul.f32 %v1162, 0.35355338
        %v1218 = vmul.f32 %v1165, 0.35355338
        %v1219 = vmul.f32 %v1202, 0.35355338
        %v1220 = vmul.f32 %v1204, 0.35355338
        %v1221 = vmul.f32 %v1207, 0.35355338
        %vm1222 = vcmask 138240
        %v1223 = vsel %vm1222, %v1210, -inf
        %1224 = vmax.xlane.f32.xlu0 %v1223
        %v1225 = vpop.xlane.xlu0 %1224
        %v1226 = vsel %vm1222, %v1211, -inf
        %1227 = vmax.xlane.f32.xlu0 %v1226
        %v1228 = vpop.xlane.xlu0 %1227
        %vm1229 = vcmask 131072
        %v1230 = vsel %vm1229, %v1212, -inf
        %1231 = vmax.xlane.f32.xlu0 %v1230
        %v1232 = vpop.xlane.xlu0 %1231
        %v1233 = vsel %vm1222, %v1213, -inf
        %1234 = vmax.xlane.f32.xlu0 %v1233
        %v1235 = vpop.xlane.xlu0 %1234
        %v1236 = vsel %vm1222, %v1214, -inf
        %1237 = vmax.xlane.f32.xlu0 %v1236
        %v1238 = vpop.xlane.xlu0 %1237
        %v1239 = vsel %vm1229, %v1215, -inf
        %1240 = vmax.xlane.f32.xlu0 %v1239
        %v1241 = vpop.xlane.xlu0 %1240
        %v1242 = vsel %vm1222, %v1216, -inf
        %1243 = vmax.xlane.f32.xlu0 %v1242
        %v1244 = vpop.xlane.xlu0 %1243
        %v1245 = vsel %vm1222, %v1217, -inf
        %1246 = vmax.xlane.f32.xlu0 %v1245
        %v1247 = vpop.xlane.xlu0 %1246
        %v1248 = vsel %vm1229, %v1218, -inf
        %1249 = vmax.xlane.f32.xlu0 %v1248
        %v1250 = vpop.xlane.xlu0 %1249
        %v1251 = vsel %vm1222, %v1219, -inf
        %1252 = vmax.xlane.f32.xlu0 %v1251
        %v1253 = vpop.xlane.xlu0 %1252
        %v1254 = vsel %vm1222, %v1220, -inf
        %1255 = vmax.xlane.f32.xlu0 %v1254
        %v1256 = vpop.xlane.xlu0 %1255
        %v1257 = vsel %vm1229, %v1221, -inf
        %1258 = vmax.xlane.f32.xlu0 %v1257
        %v1259 = vpop.xlane.xlu0 %1258
        %v1260 = vsub.f32 %v1210, %v1225
        %v1261 = vsub.f32 %v1211, %v1228
        %v1262 = vsub.f32 %v1212, %v1232
        %v1263 = vsub.f32 %v1213, %v1235
        %v1264 = vsub.f32 %v1214, %v1238
        %v1265 = vsub.f32 %v1215, %v1241
        %v1266 = vsub.f32 %v1216, %v1244
        %v1267 = vsub.f32 %v1217, %v1247
        %v1268 = vsub.f32 %v1218, %v1250
        %v1269 = vsub.f32 %v1219, %v1253
        %v1270 = vsub.f32 %v1220, %v1256
        %v1271 = vsub.f32 %v1221, %v1259
        %v1272 = vmul.f32 %v1260, 1.442695
        %v1273 = vpow.pop %v1272
        %v1274 = vmul.f32 %v1261, 1.442695
        %v1275 = vpow.pop %v1274
        %v1276 = vmul.f32 %v1262, 1.442695
        %v1277 = vpow.pop %v1276
        %v1278 = vmul.f32 %v1263, 1.442695
        %v1279 = vpow.pop %v1278
        %v1280 = vmul.f32 %v1264, 1.442695
        %v1281 = vpow.pop %v1280
        %v1282 = vmul.f32 %v1265, 1.442695
        %v1283 = vpow.pop %v1282
        %v1284 = vmul.f32 %v1266, 1.442695
        %v1285 = vpow.pop %v1284
        %v1286 = vmul.f32 %v1267, 1.442695
        %v1287 = vpow.pop %v1286
        %v1288 = vmul.f32 %v1268, 1.442695
        %v1289 = vpow.pop %v1288
        %v1290 = vmul.f32 %v1269, 1.442695
        %v1291 = vpow.pop %v1290
        %v1292 = vmul.f32 %v1270, 1.442695
        %v1293 = vpow.pop %v1292
        %v1294 = vmul.f32 %v1271, 1.442695
        %v1295 = vpow.pop %v1294
        %v1296 = vsel %vm1222, %v1273, 0.0
        %1297 = vadd.xlane.f32.xlu0 %v1296
        %v1298 = vpop.xlane.xlu0 %1297
        %v1299 = vsel %vm1222, %v1275, 0.0
        %1300 = vadd.xlane.f32.xlu0 %v1299
        %v1301 = vpop.xlane.xlu0 %1300
        %v1302 = vsel %vm1229, %v1277, 0.0
        %1303 = vadd.xlane.f32.xlu0 %v1302
        %v1304 = vpop.xlane.xlu0 %1303
        %v1305 = vsel %vm1222, %v1279, 0.0
        %1306 = vadd.xlane.f32.xlu0 %v1305
        %v1307 = vpop.xlane.xlu0 %1306
        %v1308 = vsel %vm1222, %v1281, 0.0
        %1309 = vadd.xlane.f32.xlu0 %v1308
        %v1310 = vpop.xlane.xlu0 %1309
        %v1311 = vsel %vm1229, %v1283, 0.0
        %1312 = vadd.xlane.f32.xlu0 %v1311
        %v1313 = vpop.xlane.xlu0 %1312
        %v1314 = vsel %vm1222, %v1285, 0.0
        %1315 = vadd.xlane.f32.xlu0 %v1314
        %v1316 = vpop.xlane.xlu0 %1315
        %v1317 = vsel %vm1222, %v1287, 0.0
        %1318 = vadd.xlane.f32.xlu0 %v1317
        %v1319 = vpop.xlane.xlu0 %1318
        %v1320 = vsel %vm1229, %v1289, 0.0
        %1321 = vadd.xlane.f32.xlu0 %v1320
        %v1322 = vpop.xlane.xlu0 %1321
        %v1323 = vsel %vm1222, %v1291, 0.0
        %1324 = vadd.xlane.f32.xlu0 %v1323
        %v1325 = vpop.xlane.xlu0 %1324
        %v1326 = vsel %vm1222, %v1293, 0.0
        %1327 = vadd.xlane.f32.xlu0 %v1326
        %v1328 = vpop.xlane.xlu0 %1327
        %v1329 = vsel %vm1229, %v1295, 0.0
        %1330 = vadd.xlane.f32.xlu0 %v1329
        %v1331 = vpop.xlane.xlu0 %1330
        %v1332 = vrcp.pop %v1298
        %v1333 = vrcp.pop %v1301
        %v1334 = vrcp.pop %v1304
        %v1335 = vrcp.pop %v1307
        %v1336 = vrcp.pop %v1310
        %v1337 = vrcp.pop %v1313
        %v1338 = vrcp.pop %v1316
        %v1339 = vrcp.pop %v1319
        %v1340 = vrcp.pop %v1322
        %v1341 = vrcp.pop %v1325
        %v1342 = vrcp.pop %v1328
        %v1343 = vrcp.pop %v1331
        %v1344 = vmul.f32 %v1273, %v1332
        %v1345 = vmul.f32 %v1275, %v1333
        %v1346 = vmul.f32 %v1277, %v1334
        %v1347 = vmul.f32 %v1279, %v1335
        %v1348 = vmul.f32 %v1281, %v1336
        %v1349 = vmul.f32 %v1283, %v1337
        %v1350 = vmul.f32 %v1285, %v1338
        %v1351 = vmul.f32 %v1287, %v1339
        %v1352 = vmul.f32 %v1289, %v1340
        %v1353 = vmul.f32 %v1291, %v1341
        %v1354 = vmul.f32 %v1293, %v1342
        %v1355 = vmul.f32 %v1295, %v1343
        %v1356 = vpack.c.bf16 %v1344, %v1344
        %v1357 = vpack.c.bf16 %v1345, %v1345
        %v1358 = vpack.c.bf16 %v1346, %v1346
        %v1359 = vpack.c.bf16 %v1347, %v1347
        %v1360 = vpack.c.bf16 %v1348, %v1348
        %v1361 = vpack.c.bf16 %v1349, %v1349
        %v1362 = vpack.c.bf16 %v1350, %v1350
        %v1363 = vpack.c.bf16 %v1351, %v1351
        %v1364 = vpack.c.bf16 %v1352, %v1352
        %v1365 = vpack.c.bf16 %v1353, %v1353
        %v1366 = vpack.c.bf16 %v1354, %v1354
        %v1367 = vpack.c.bf16 %v1355, %v1355
        %v1371 = vunpack.c.l.b16 %v1356
        %v1372 = vunpack.c.l.b16 %v1357
        %v1373 = vunpack.c.l.b16 %v1358
        %v1374 = vpack.c.b16 %v1372, %v1371
        %v1375 = vpack.c.b16 %v1373, %v1373
        %1376 = vrot.lane.b32.xlu0 %v1047, 64
        %v1377 = vpop.permute.xlu0 %1376
        %1378 = vrot.lane.b32.xlu0 %v1048, 64
        %v1379 = vpop.permute.xlu0 %1378
        %v1382 = vsel %vm1222, %v1374, 0
        %v1385 = vsel %vm1222, %v1375, 0
        %vm1387 = vcmask 1040384
        %v1388 = vsel 0, 4294967295, 65535
        %v1389 = vsel %vm1387, %v1388, 0
        %v1391 = vand.u32 %v1379, %v1389
        %1393 = vmatpush.bf16.msra.mxu0 0
        %1394 = vmatpush.bf16.msra.mxu0 0
        %1395 = vmatpush.bf16.msra.mxu0 0
        %1396 = vmatpush.bf16.msra.mxu0 0
        %1397 = vmatpush.bf16.msra.mxu0 0
        %1398 = vmatpush.bf16.msra.mxu0 0
        %1399 = vmatpush.bf16.msra.mxu0 %v1391
        %1400 = vmatpush.bf16.msra.mxu0 %v1377
        %1401 = vmatmul.bf16.gmra.mxu0 %v1382
        %v1402 = vpop.f32.mrf.mxu0
        %v1403 = vadd.f32 0.0, %v1402
        %v1404 = vpop.f32.mrf.mxu0
        %v1405 = vadd.f32 0.0, %v1404
        %1406 = vmatmul.bf16.gmra.mxu0 %v1385
        %v1407 = vpop.f32.mrf.mxu0
        %v1408 = vadd.f32 0.0, %v1407
        %v1409 = vpop.f32.mrf.mxu0
        %1410 = vdwg.mxu0
        %v1414 = vunpack.c.l.b16 %v1359
        %v1415 = vunpack.c.l.b16 %v1360
        %v1416 = vunpack.c.l.b16 %v1361
        %v1417 = vpack.c.b16 %v1415, %v1414
        %v1418 = vpack.c.b16 %v1416, %v1416
        %1419 = vrot.lane.b32.xlu0 %v1090, 64
        %v1420 = vpop.permute.xlu0 %1419
        %1421 = vrot.lane.b32.xlu0 %v1091, 64
        %v1422 = vpop.permute.xlu0 %1421
        %v1425 = vsel %vm1222, %v1417, 0
        %v1428 = vsel %vm1222, %v1418, 0
        %v1431 = vand.u32 %v1422, %v1389
        %1433 = vmatpush.bf16.msra.mxu0 0
        %1434 = vmatpush.bf16.msra.mxu0 0
        %1435 = vmatpush.bf16.msra.mxu0 0
        %1436 = vmatpush.bf16.msra.mxu0 0
        %1437 = vmatpush.bf16.msra.mxu0 0
        %1438 = vmatpush.bf16.msra.mxu0 0
        %1439 = vmatpush.bf16.msra.mxu0 %v1431
        %1440 = vmatpush.bf16.msra.mxu0 %v1420
        %1441 = vmatmul.bf16.gmra.mxu0 %v1425
        %v1442 = vpop.f32.mrf.mxu0
        %v1443 = vadd.f32 0.0, %v1442
        %v1444 = vpop.f32.mrf.mxu0
        %v1445 = vadd.f32 0.0, %v1444
        %1446 = vmatmul.bf16.gmra.mxu0 %v1428
        %v1447 = vpop.f32.mrf.mxu0
        %v1448 = vadd.f32 0.0, %v1447
        %v1449 = vpop.f32.mrf.mxu0
        %1450 = vdwg.mxu0
        %v1454 = vunpack.c.l.b16 %v1362
        %v1455 = vunpack.c.l.b16 %v1363
        %v1456 = vunpack.c.l.b16 %v1364
        %v1457 = vpack.c.b16 %v1455, %v1454
        %v1458 = vpack.c.b16 %v1456, %v1456
        %1459 = vrot.lane.b32.xlu0 %v1132, 64
        %v1460 = vpop.permute.xlu0 %1459
        %1461 = vrot.lane.b32.xlu0 %v1133, 64
        %v1462 = vpop.permute.xlu0 %1461
        %v1465 = vsel %vm1222, %v1457, 0
        %v1468 = vsel %vm1222, %v1458, 0
        %v1471 = vand.u32 %v1462, %v1389
        %1473 = vmatpush.bf16.msra.mxu0 0
        %1474 = vmatpush.bf16.msra.mxu0 0
        %1475 = vmatpush.bf16.msra.mxu0 0
        %1476 = vmatpush.bf16.msra.mxu0 0
        %1477 = vmatpush.bf16.msra.mxu0 0
        %1478 = vmatpush.bf16.msra.mxu0 0
        %1479 = vmatpush.bf16.msra.mxu0 %v1471
        %1480 = vmatpush.bf16.msra.mxu0 %v1460
        %1481 = vmatmul.bf16.gmra.mxu0 %v1465
        %v1482 = vpop.f32.mrf.mxu0
        %v1483 = vadd.f32 0.0, %v1482
        %v1484 = vpop.f32.mrf.mxu0
        %v1485 = vadd.f32 0.0, %v1484
        %1486 = vmatmul.bf16.gmra.mxu0 %v1468
        %v1487 = vpop.f32.mrf.mxu0
        %v1488 = vadd.f32 0.0, %v1487
        %v1489 = vpop.f32.mrf.mxu0
        %1490 = vdwg.mxu0
        %v1494 = vunpack.c.l.b16 %v1365
        %v1495 = vunpack.c.l.b16 %v1366
        %v1496 = vunpack.c.l.b16 %v1367
        %v1497 = vpack.c.b16 %v1495, %v1494
        %v1498 = vpack.c.b16 %v1496, %v1496
        %1499 = vrot.lane.b32.xlu0 %v1174, 64
        %v1500 = vpop.permute.xlu0 %1499
        %1501 = vrot.lane.b32.xlu0 %v1175, 64
        %v1502 = vpop.permute.xlu0 %1501
        %v1505 = vsel %vm1222, %v1497, 0
        %v1508 = vsel %vm1222, %v1498, 0
        %v1511 = vand.u32 %v1502, %v1389
        %1513 = vmatpush.bf16.msra.mxu0 0
        %1514 = vmatpush.bf16.msra.mxu0 0
        %1515 = vmatpush.bf16.msra.mxu0 0
        %1516 = vmatpush.bf16.msra.mxu0 0
        %1517 = vmatpush.bf16.msra.mxu0 0
        %1518 = vmatpush.bf16.msra.mxu0 0
        %1519 = vmatpush.bf16.msra.mxu0 %v1511
        %1520 = vmatpush.bf16.msra.mxu0 %v1500
        %1521 = vmatmul.bf16.gmra.mxu0 %v1505
        %v1522 = vpop.f32.mrf.mxu0
        %v1523 = vadd.f32 0.0, %v1522
        %v1524 = vpop.f32.mrf.mxu0
        %v1525 = vadd.f32 0.0, %v1524
        %1526 = vmatmul.bf16.gmra.mxu0 %v1508
        %v1527 = vpop.f32.mrf.mxu0
        %v1528 = vadd.f32 0.0, %v1527
        %v1529 = vpop.f32.mrf.mxu0
        %1530 = vdwg.mxu0
        %v1531 = vpack.c.bf16 %v1403, %v1403
        %v1532 = vpack.c.bf16 %v1405, %v1405
        %v1533 = vpack.c.bf16 %v1408, %v1408
        %v1534 = vpack.c.bf16 %v1443, %v1443
        %v1535 = vpack.c.bf16 %v1445, %v1445
        %v1536 = vpack.c.bf16 %v1448, %v1448
        %v1537 = vpack.c.bf16 %v1483, %v1483
        %v1538 = vpack.c.bf16 %v1485, %v1485
        %v1539 = vpack.c.bf16 %v1488, %v1488
        %v1540 = vpack.c.bf16 %v1523, %v1523
        %v1541 = vpack.c.bf16 %v1525, %v1525
        %v1542 = vpack.c.bf16 %v1528, %v1528
        %v1543 = vld [vmem:[%s772] sm:$0xf]
        %v1544 = vld [vmem:[%s772 + $0x4] sm:$0xf]
        %v1545 = vld [vmem:[%s772 + $0x8] sm:$0xf]
        %v1546 = vld [vmem:[%s772 + $0xc] sm:$0xf]
        %v1550 = vunpack.c.l.b16 %v1531
        %v1551 = vunpack.c.l.b16 %v1532
        %v1552 = vunpack.c.l.b16 %v1533
        %v1553 = vpack.c.b16 %v1551, %v1550
        %v1554 = vpack.c.b16 %v1552, %v1552
        %v1556 = vsel %vm1053, %v1553, 0
        %v1559 = vsel %vm1053, %v1554, 0
        %vm1561 = vcmask 1043456
        %v1563 = vsel %vm1561, %v1543, 0
        %1565 = vmatpush.bf16.msra.mxu0 0
        %1566 = vmatpush.bf16.msra.mxu0 0
        %1567 = vmatpush.bf16.msra.mxu0 0
        %1568 = vmatpush.bf16.msra.mxu0 0
        %1569 = vmatpush.bf16.msra.mxu0 0
        %1570 = vmatpush.bf16.msra.mxu0 0
        %1571 = vmatpush.bf16.msra.mxu0 0
        %1572 = vmatpush.bf16.msra.mxu0 %v1563
        %1573 = vmatmul.bf16.gmra.mxu0 %v1556
        %v1574 = vpop.f32.mrf.mxu0
        %v1575 = vadd.f32 0.0, %v1574
        %v1576 = vpop.f32.mrf.mxu0
        %v1577 = vadd.f32 0.0, %v1576
        %1578 = vmatmul.bf16.gmra.mxu0 %v1559
        %v1579 = vpop.f32.mrf.mxu0
        %v1580 = vadd.f32 0.0, %v1579
        %v1581 = vpop.f32.mrf.mxu0
        %1582 = vdwg.mxu0
        %v1586 = vunpack.c.l.b16 %v1534
        %v1587 = vunpack.c.l.b16 %v1535
        %v1588 = vunpack.c.l.b16 %v1536
        %v1589 = vpack.c.b16 %v1587, %v1586
        %v1590 = vpack.c.b16 %v1588, %v1588
        %v1592 = vsel %vm1053, %v1589, 0
        %v1595 = vsel %vm1053, %v1590, 0
        %v1598 = vsel %vm1561, %v1544, 0
        %1600 = vmatpush.bf16.msra.mxu0 0
        %1601 = vmatpush.bf16.msra.mxu0 0
        %1602 = vmatpush.bf16.msra.mxu0 0
        %1603 = vmatpush.bf16.msra.mxu0 0
        %1604 = vmatpush.bf16.msra.mxu0 0
        %1605 = vmatpush.bf16.msra.mxu0 0
        %1606 = vmatpush.bf16.msra.mxu0 0
        %1607 = vmatpush.bf16.msra.mxu0 %v1598
        %1608 = vmatmul.bf16.gmra.mxu0 %v1592
        %v1609 = vpop.f32.mrf.mxu0
        %v1610 = vadd.f32 0.0, %v1609
        %v1611 = vpop.f32.mrf.mxu0
        %v1612 = vadd.f32 0.0, %v1611
        %1613 = vmatmul.bf16.gmra.mxu0 %v1595
        %v1614 = vpop.f32.mrf.mxu0
        %v1615 = vadd.f32 0.0, %v1614
        %v1616 = vpop.f32.mrf.mxu0
        %1617 = vdwg.mxu0
        %v1621 = vunpack.c.l.b16 %v1537
        %v1622 = vunpack.c.l.b16 %v1538
        %v1623 = vunpack.c.l.b16 %v1539
        %v1624 = vpack.c.b16 %v1622, %v1621
        %v1625 = vpack.c.b16 %v1623, %v1623
        %v1627 = vsel %vm1053, %v1624, 0
        %v1630 = vsel %vm1053, %v1625, 0
        %v1633 = vsel %vm1561, %v1545, 0
        %1635 = vmatpush.bf16.msra.mxu0 0
        %1636 = vmatpush.bf16.msra.mxu0 0
        %1637 = vmatpush.bf16.msra.mxu0 0
        %1638 = vmatpush.bf16.msra.mxu0 0
        %1639 = vmatpush.bf16.msra.mxu0 0
        %1640 = vmatpush.bf16.msra.mxu0 0
        %1641 = vmatpush.bf16.msra.mxu0 0
        %1642 = vmatpush.bf16.msra.mxu0 %v1633
        %1643 = vmatmul.bf16.gmra.mxu0 %v1627
        %v1644 = vpop.f32.mrf.mxu0
        %v1645 = vadd.f32 0.0, %v1644
        %v1646 = vpop.f32.mrf.mxu0
        %v1647 = vadd.f32 0.0, %v1646
        %1648 = vmatmul.bf16.gmra.mxu0 %v1630
        %v1649 = vpop.f32.mrf.mxu0
        %v1650 = vadd.f32 0.0, %v1649
        %v1651 = vpop.f32.mrf.mxu0
        %1652 = vdwg.mxu0
        %v1656 = vunpack.c.l.b16 %v1540
        %v1657 = vunpack.c.l.b16 %v1541
        %v1658 = vunpack.c.l.b16 %v1542
        %v1659 = vpack.c.b16 %v1657, %v1656
        %v1660 = vpack.c.b16 %v1658, %v1658
        %v1662 = vsel %vm1053, %v1659, 0
        %v1665 = vsel %vm1053, %v1660, 0
        %v1668 = vsel %vm1561, %v1546, 0
        %1670 = vmatpush.bf16.msra.mxu0 0
        %1671 = vmatpush.bf16.msra.mxu0 0
        %1672 = vmatpush.bf16.msra.mxu0 0
        %1673 = vmatpush.bf16.msra.mxu0 0
        %1674 = vmatpush.bf16.msra.mxu0 0
        %1675 = vmatpush.bf16.msra.mxu0 0
        %1676 = vmatpush.bf16.msra.mxu0 0
        %1677 = vmatpush.bf16.msra.mxu0 %v1668
        %1678 = vmatmul.bf16.gmra.mxu0 %v1662
        %v1679 = vpop.f32.mrf.mxu0
        %v1680 = vadd.f32 0.0, %v1679
        %v1681 = vpop.f32.mrf.mxu0
        %v1682 = vadd.f32 0.0, %v1681
        %1683 = vmatmul.bf16.gmra.mxu0 %v1665
        %v1684 = vpop.f32.mrf.mxu0
        %v1685 = vadd.f32 0.0, %v1684
        %v1686 = vpop.f32.mrf.mxu0
        %1687 = vdwg.mxu0
        %v1688 = vsel %vm870, %v1575, 0.0
        %v1689 = vsel %vm870, %v1610, 0.0
        %v1690 = vadd.f32 %v1688, %v1689
        %v1691 = vsel %vm870, %v1645, 0.0
        %v1692 = vadd.f32 %v1690, %v1691
        %v1693 = vsel %vm870, %v1680, 0.0
        %v1694 = vadd.f32 %v1692, %v1693
        %v1695 = vsel %vm870, %v1577, 0.0
        %v1696 = vsel %vm870, %v1612, 0.0
        %v1697 = vadd.f32 %v1695, %v1696
        %v1698 = vsel %vm870, %v1647, 0.0
        %v1699 = vadd.f32 %v1697, %v1698
        %v1700 = vsel %vm870, %v1682, 0.0
        %v1701 = vadd.f32 %v1699, %v1700
        %v1702 = vsel %vm877, %v1580, 0.0
        %v1703 = vsel %vm877, %v1615, 0.0
        %v1704 = vadd.f32 %v1702, %v1703
        %v1705 = vsel %vm877, %v1650, 0.0
        %v1706 = vadd.f32 %v1704, %v1705
        %v1707 = vsel %vm877, %v1685, 0.0
        %v1708 = vadd.f32 %v1706, %v1707
        %v1709 = vld [vmem:[%s775] sm:$0x1]
        %v1711 = vperm.slane %v1709, 0
        %v1713 = vadd.f32 %v1694, %v1711
        %v1714 = vadd.f32 %v1701, %v1711
        %v1715 = vadd.f32 %v1708, %v1711
        %v1716 = vadd.f32 %v950, %v1713
        %v1717 = vadd.f32 %v951, %v1714
        %v1718 = vadd.f32 %v952, %v1715
        %v1719 = vsel %vm870, %v1716, 0.0
        %1720 = vadd.xlane.f32.xlu0 %v1719
        %v1721 = vpop.xlane.xlu0 %1720
        %v1722 = vsel %vm870, %v1717, 0.0
        %1723 = vadd.xlane.f32.xlu0 %v1722
        %v1724 = vpop.xlane.xlu0 %1723
        %v1725 = vsel %vm877, %v1718, 0.0
        %1726 = vadd.xlane.f32.xlu0 %v1725
        %v1727 = vpop.xlane.xlu0 %1726
        %v1728 = vmul.f32 %v1721, %v887
        %v1729 = vmul.f32 %v1724, %v887
        %v1730 = vmul.f32 %v1727, %v887
        %v1731 = vsub.f32 %v1716, %v1728
        %v1732 = vsub.f32 %v1717, %v1729
        %v1733 = vsub.f32 %v1718, %v1730
        %v1734 = vmul.f32 %v1731, %v1731
        %v1735 = vmul.f32 %v1732, %v1732
        %v1736 = vmul.f32 %v1733, %v1733
        %v1737 = vsel %vm870, %v1734, 0.0
        %1738 = vadd.xlane.f32.xlu0 %v1737
        %v1739 = vpop.xlane.xlu0 %1738
        %v1740 = vsel %vm870, %v1735, 0.0
        %1741 = vadd.xlane.f32.xlu0 %v1740
        %v1742 = vpop.xlane.xlu0 %1741
        %v1743 = vsel %vm877, %v1736, 0.0
        %1744 = vadd.xlane.f32.xlu0 %v1743
        %v1745 = vpop.xlane.xlu0 %1744
        %v1746 = vmul.f32 %v1739, %v887
        %v1747 = vmul.f32 %v1742, %v887
        %v1748 = vmul.f32 %v1745, %v887
        %v1749 = vadd.f32 %v1746, 1e-05
        %v1750 = vadd.f32 %v1747, 1e-05
        %v1751 = vadd.f32 %v1748, 1e-05
        %v1752 = vrsqrt.pop %v1749
        %v1753 = vmul.f32 %v1752, %v1749
        %v1754 = vmul.f32 %v1753, %v1752
        %v1755 = vmul.f32 0.5, %v1754
        %v1756 = vsub.f32 1.5, %v1755
        %v1757 = vmul.f32 %v1752, %v1756
        %vm1758 = vweird.f32 %v1749
        %vm1759 = vweird.f32 %v1752
        %vm1760 = vmor %vm1758, %vm1759
        %v1761 = vsel %vm1760, %v1752, %v1757
        %v1762 = vrsqrt.pop %v1750
        %v1763 = vmul.f32 %v1762, %v1750
        %v1764 = vmul.f32 %v1763, %v1762
        %v1765 = vmul.f32 0.5, %v1764
        %v1766 = vsub.f32 1.5, %v1765
        %v1767 = vmul.f32 %v1762, %v1766
        %vm1768 = vweird.f32 %v1750
        %vm1769 = vweird.f32 %v1762
        %vm1770 = vmor %vm1768, %vm1769
        %v1771 = vsel %vm1770, %v1762, %v1767
        %v1772 = vrsqrt.pop %v1751
        %v1773 = vmul.f32 %v1772, %v1751
        %v1774 = vmul.f32 %v1773, %v1772
        %v1775 = vmul.f32 0.5, %v1774
        %v1776 = vsub.f32 1.5, %v1775
        %v1777 = vmul.f32 %v1772, %v1776
        %vm1778 = vweird.f32 %v1751
        %vm1779 = vweird.f32 %v1772
        %vm1780 = vmor %vm1778, %vm1779
        %v1781 = vsel %vm1780, %v1772, %v1777
        %v1782 = vmul.f32 %v1731, %v1761
        %v1783 = vmul.f32 %v1732, %v1771
        %v1784 = vmul.f32 %v1733, %v1781
        %v1785 = vperm.slane %v869, 2
        %v1786 = vmul.f32 %v1782, %v1785
        %v1787 = vmul.f32 %v1783, %v1785
        %v1788 = vmul.f32 %v1784, %v1785
        %v1789 = vperm.slane %v869, 3
        %v1790 = vadd.f32 %v1786, %v1789
        %v1791 = vadd.f32 %v1787, %v1789
        %v1792 = vadd.f32 %v1788, %v1789
        %v1793 = vpack.c.bf16 %v1791, %v1790
        %v1794 = vpack.c.bf16 %v1792, %v1792
        %v1795 = vld [vmem:[%s780] sm:$0xf]
        %v1796 = vld [vmem:[%s780 + $0x4] sm:$0xf]
        %v1797 = vld [vmem:[%s780 + $0x8] sm:$0xf]
        %v1798 = vld [vmem:[%s780 + $0xc] sm:$0xf]
        %v1799 = vld [vmem:[%s783] sm:$0x1]
        %v1801 = vperm.slane %v1799, 0
        %v1807 = vunpack.c.l.b16 %v1795
        %v1808 = vunpack.c.l.b16 %v1796
        %v1809 = vunpack.c.l.b16 %v1797
        %v1810 = vunpack.c.l.b16 %v1798
        %v1811 = vpack.c.b16 %v1808, %v1807
        %v1812 = vpack.c.b16 %v1810, %v1809
        %v1816 = vsel %vm870, %v1793, 0
        %v1819 = vsel %vm870, %v1794, 0
        %1821 = vmatpush.bf16.msra.mxu0 0
        %1822 = vmatpush.bf16.msra.mxu0 0
        %1823 = vmatpush.bf16.msra.mxu0 0
        %1824 = vmatpush.bf16.msra.mxu0 0
        %1825 = vmatpush.bf16.msra.mxu0 0
        %1826 = vmatpush.bf16.msra.mxu0 0
        %1827 = vmatpush.bf16.msra.mxu0 %v1812
        %1828 = vmatpush.bf16.msra.mxu0 %v1811
        %1829 = vmatmul.bf16.gmra.mxu0 %v1816
        %v1830 = vpop.f32.mrf.mxu0
        %v1831 = vadd.f32 %v1801, %v1830
        %v1832 = vpop.f32.mrf.mxu0
        %v1833 = vadd.f32 %v1801, %v1832
        %1834 = vmatmul.bf16.gmra.mxu0 %v1819
        %v1835 = vpop.f32.mrf.mxu0
        %v1836 = vadd.f32 %v1801, %v1835
        %v1837 = vpop.f32.mrf.mxu0
        %1838 = vdwg.mxu0
        %v1839 = vmul.f32 %v1831, 0.5
        %v1840 = vmul.f32 %v1833, 0.5
        %v1841 = vmul.f32 %v1836, 0.5
        %v1842 = vmul.f32 %v1831, 0.044715
        %v1843 = vmul.f32 %v1833, 0.044715
        %v1844 = vmul.f32 %v1836, 0.044715
        %v1845 = vmul.f32 %v1842, %v1831
        %v1846 = vmul.f32 %v1843, %v1833
        %v1847 = vmul.f32 %v1844, %v1836
        %v1848 = vmul.f32 %v1845, %v1831
        %v1849 = vmul.f32 %v1846, %v1833
        %v1850 = vmul.f32 %v1847, %v1836
        %v1851 = vadd.f32 %v1831, %v1848
        %v1852 = vadd.f32 %v1833, %v1849
        %v1853 = vadd.f32 %v1836, %v1850
        %v1854 = vmul.f32 %v1851, 0.7978846
        %v1855 = vmul.f32 %v1852, 0.7978846
        %v1856 = vmul.f32 %v1853, 0.7978846
        %v1857 = vtanh.pop %v1854
        %v1858 = vtanh.pop %v1855
        %v1859 = vtanh.pop %v1856
        %v1860 = vadd.f32 %v1857, 1.0
        %v1861 = vadd.f32 %v1858, 1.0
        %v1862 = vadd.f32 %v1859, 1.0
        %v1863 = vmul.f32 %v1839, %v1860
        %v1864 = vmul.f32 %v1840, %v1861
        %v1865 = vmul.f32 %v1841, %v1862
        %v1866 = vpack.c.bf16 %v1864, %v1863
        %v1867 = vpack.c.bf16 %v1865, %v1865
        %v1868 = vld [vmem:[%s788] sm:$0xf]
        %v1869 = vld [vmem:[%s788 + $0x4] sm:$0xf]
        %v1870 = vld [vmem:[%s788 + $0x8] sm:$0xf]
        %v1871 = vld [vmem:[%s788 + $0xc] sm:$0xf]
        %v1872 = vld [vmem:[%s788 + $0x10] sm:$0xf]
        %v1873 = vld [vmem:[%s788 + $0x14] sm:$0xf]
        %v1874 = vld [vmem:[%s788 + $0x18] sm:$0xf]
        %v1875 = vld [vmem:[%s788 + $0x1c] sm:$0xf]
        %v1876 = vld [vmem:[%s788 + $0x20] sm:$0xf]
        %v1877 = vld [vmem:[%s788 + $0x24] sm:$0xf]
        %v1878 = vld [vmem:[%s788 + $0x28] sm:$0xf]
        %v1879 = vld [vmem:[%s788 + $0x2c] sm:$0xf]
        %v1880 = vld [vmem:[%s788 + $0x30] sm:$0xf]
        %v1881 = vld [vmem:[%s788 + $0x34] sm:$0xf]
        %v1882 = vld [vmem:[%s788 + $0x38] sm:$0xf]
        %v1883 = vld [vmem:[%s788 + $0x3c] sm:$0xf]
        %v1884 = vld [vmem:[%s791] sm:$0x1]
        %v1886 = vperm.slane %v1884, 0
        %v1904 = vunpack.c.l.b16 %v1868
        %v1905 = vunpack.c.l.b16 %v1869
        %v1906 = vunpack.c.l.b16 %v1870
        %v1907 = vunpack.c.l.b16 %v1871
        %v1908 = vunpack.c.l.b16 %v1872
        %v1909 = vunpack.c.l.b16 %v1873
        %v1910 = vunpack.c.l.b16 %v1874
        %v1911 = vunpack.c.l.b16 %v1875
        %v1912 = vunpack.c.l.b16 %v1876
        %v1913 = vunpack.c.l.b16 %v1877
        %v1914 = vunpack.c.l.b16 %v1878
        %v1915 = vunpack.c.l.b16 %v1879
        %v1916 = vunpack.c.l.b16 %v1880
        %v1917 = vunpack.c.l.b16 %v1881
        %v1918 = vunpack.c.l.b16 %v1882
        %v1919 = vunpack.c.l.b16 %v1883
        %v1920 = vpack.c.b16 %v1905, %v1904
        %v1921 = vpack.c.b16 %v1907, %v1906
        %v1922 = vpack.c.b16 %v1909, %v1908
        %v1923 = vpack.c.b16 %v1911, %v1910
        %v1924 = vpack.c.b16 %v1913, %v1912
        %v1925 = vpack.c.b16 %v1915, %v1914
        %v1926 = vpack.c.b16 %v1917, %v1916
        %v1927 = vpack.c.b16 %v1919, %v1918
        %1936 = vmatpush.bf16.msra.mxu0 %v1927
        %1937 = vmatpush.bf16.msra.mxu0 %v1926
        %1938 = vmatpush.bf16.msra.mxu0 %v1925
        %1939 = vmatpush.bf16.msra.mxu0 %v1924
        %1940 = vmatpush.bf16.msra.mxu0 %v1923
        %1941 = vmatpush.bf16.msra.mxu0 %v1922
        %1942 = vmatpush.bf16.msra.mxu0 %v1921
        %1943 = vmatpush.bf16.msra.mxu0 %v1920
        %1944 = vmatmul.bf16.gmra.mxu0 %v1866
        %v1945 = vpop.f32.mrf.mxu0
        %v1946 = vadd.f32 %v1886, %v1945
        %v1947 = vpop.f32.mrf.mxu0
        %v1948 = vadd.f32 %v1886, %v1947
        %1949 = vmatmul.bf16.gmra.mxu0 %v1867
        %v1950 = vpop.f32.mrf.mxu0
        %v1951 = vadd.f32 %v1886, %v1950
        %v1952 = vpop.f32.mrf.mxu0
        %1953 = vdwg.mxu0
        %v1954 = vadd.f32 %v1716, %v1946
        %v1955 = vadd.f32 %v1717, %v1948
        %v1956 = vadd.f32 %v1718, %v1951
        %1957 = vst.msk [vmem:[#allocation2] sm:$0xff] %vm870, %v1954
        %1958 = vst.msk [vmem:[#allocation2 + $0x8] sm:$0xff] %vm870, %v1955
        %1959 = vst.msk [vmem:[#allocation2 + $0x10] sm:$0x1] %vm877, %v1956
        %p1960 = scmp.eq.s32.totalorder %s39, 1
        // Predicated region
        $region105: #{tpu_custom_call.1} parent=99 // pred_check
          %p1961 = pneg %p1960
        $region106: #{tpu_custom_call.1} parent=99 // pred_check_branch
          %1963 = sbr.rel (%p1961) target = $region108
        $region107: #{tpu_custom_call.1} parent=99 // pred_region
          %v1964 = vld [vmem:[%s14] sm:$0x1]
          %v1965 = vld [vmem:[%s15] sm:$0x1]
          %v1966 = vsel %vm877, %v1956, 0.0
          %1967 = vadd.xlane.f32.xlu0 %v1966
          %v1968 = vpop.xlane.xlu0 %1967
          %v1969 = vmul.f32 %v1968, %v887
          %v1970 = vsub.f32 %v1956, %v1969
          %v1971 = vmul.f32 %v1970, %v1970
          %v1972 = vsel %vm877, %v1971, 0.0
          %1973 = vadd.xlane.f32.xlu0 %v1972
          %v1974 = vpop.xlane.xlu0 %1973
          %v1975 = vmul.f32 %v1974, %v887
          %v1976 = vadd.f32 %v1975, 1e-05
          %v1977 = vrsqrt.pop %v1976
          %v1978 = vmul.f32 %v1977, %v1976
          %v1979 = vmul.f32 %v1978, %v1977
          %v1980 = vmul.f32 0.5, %v1979
          %v1981 = vsub.f32 1.5, %v1980
          %v1982 = vmul.f32 %v1977, %v1981
          %vm1983 = vweird.f32 %v1976
          %vm1984 = vweird.f32 %v1977
          %vm1985 = vmor %vm1983, %vm1984
          %v1986 = vsel %vm1985, %v1977, %v1982
          %v1987 = vmul.f32 %v1970, %v1986
          %v1988 = vmul.f32 %v1987, %v1964
          %v1989 = vadd.f32 %v1988, %v1965
          %v1990 = vpack.c.bf16 %v1989, %v1989
          %v1991 = vld [vmem:[%s16] sm:$0xf]
          %v1992 = vld [vmem:[%s16 + $0x4] sm:$0xf]
          %v1993 = vld [vmem:[%s16 + $0x8] sm:$0xf]
          %v1994 = vld [vmem:[%s16 + $0xc] sm:$0xf]
          %v1995 = vld [vmem:[%s17] sm:$0x1]
          %v2000 = vunpack.c.l.b16 %v1991
          %v2001 = vunpack.c.l.b16 %v1992
          %v2002 = vunpack.c.l.b16 %v1993
          %v2003 = vunpack.c.l.b16 %v1994
          %v2004 = vpack.c.b16 %v2001, %v2000
          %v2005 = vpack.c.b16 %v2003, %v2002
          %v2009 = vsel %vm870, %v1990, 0
          %2011 = vmatpush.bf16.msra.mxu0 0
          %2012 = vmatpush.bf16.msra.mxu0 0
          %2013 = vmatpush.bf16.msra.mxu0 0
          %2014 = vmatpush.bf16.msra.mxu0 0
          %2015 = vmatpush.bf16.msra.mxu0 0
          %2016 = vmatpush.bf16.msra.mxu0 0
          %2017 = vmatpush.bf16.msra.mxu0 %v2005
          %2018 = vmatpush.bf16.msra.mxu0 %v2004
          %2019 = vmatmul.bf16.gmra.mxu0 %v2009
          %v2020 = vpop.f32.mrf.mxu0
          %v2021 = vadd.f32 %v1995, %v2020
          %v2022 = vpop.f32.mrf.mxu0
          %2023 = vdwg.mxu0
          %v2024 = vmul.f32 %v2021, 0.5
          %v2025 = vmul.f32 %v2021, 0.044715
          %v2026 = vmul.f32 %v2025, %v2021
          %v2027 = vmul.f32 %v2026, %v2021
          %v2028 = vadd.f32 %v2021, %v2027
          %v2029 = vmul.f32 %v2028, 0.7978846
          %v2030 = vtanh.pop %v2029
          %v2031 = vadd.f32 %v2030, 1.0
          %v2032 = vmul.f32 %v2024, %v2031
          %v2033 = vpack.c.bf16 %v2032, %v2032
          %v2034 = vld [vmem:[%s18] sm:$0xf]
          %v2035 = vld [vmem:[%s18 + $0x4] sm:$0xf]
          %v2036 = vld [vmem:[%s18 + $0x8] sm:$0xf]
          %v2037 = vld [vmem:[%s18 + $0xc] sm:$0xf]
          %v2038 = vld [vmem:[%s18 + $0x10] sm:$0xf]
          %v2039 = vld [vmem:[%s18 + $0x14] sm:$0xf]
          %v2040 = vld [vmem:[%s18 + $0x18] sm:$0xf]
          %v2041 = vld [vmem:[%s18 + $0x1c] sm:$0xf]
          %v2042 = vld [vmem:[%s19] sm:$0x1]
          %v2051 = vunpack.c.l.b16 %v2034
          %v2052 = vunpack.c.l.b16 %v2035
          %v2053 = vunpack.c.l.b16 %v2036
          %v2054 = vunpack.c.l.b16 %v2037
          %v2055 = vunpack.c.l.b16 %v2038
          %v2056 = vunpack.c.l.b16 %v2039
          %v2057 = vunpack.c.l.b16 %v2040
          %v2058 = vunpack.c.l.b16 %v2041
          %v2059 = vpack.c.b16 %v2052, %v2051
          %v2060 = vpack.c.b16 %v2054, %v2053
          %v2061 = vpack.c.b16 %v2056, %v2055
          %v2062 = vpack.c.b16 %v2058, %v2057
          %vm2067 = vcmask 523264
          %v2069 = vsel %vm2067, %v2033, 0
          %2071 = vmatpush.bf16.msra.mxu0 0
          %2072 = vmatpush.bf16.msra.mxu0 0
          %2073 = vmatpush.bf16.msra.mxu0 0
          %2074 = vmatpush.bf16.msra.mxu0 0
          %2075 = vmatpush.bf16.msra.mxu0 %v2062
          %2076 = vmatpush.bf16.msra.mxu0 %v2061
          %2077 = vmatpush.bf16.msra.mxu0 %v2060
          %2078 = vmatpush.bf16.msra.mxu0 %v2059
          %2079 = vmatmul.bf16.gmra.mxu0 %v2069
          %v2080 = vpop.f32.mrf.mxu0
          %v2081 = vadd.f32 %v2042, %v2080
          %v2082 = vpop.f32.mrf.mxu0
          %2083 = vdwg.mxu0
          %vm2084 = vcmask 73728
          %v2085 = vsel %vm2084, %v2081, -inf
          %2086 = vmax.xlane.f32.xlu0 %v2085
          %v2087 = vpop.xlane.xlu0 %2086
          %v2088 = vsub.f32 %v2081, %v2087
          %v2089 = vmul.f32 %v2088, 1.442695
          %v2090 = vpow.pop %v2089
          %v2091 = vsel %vm2084, %v2090, 0.0
          %2092 = vadd.xlane.f32.xlu0 %v2091
          %v2093 = vpop.xlane.xlu0 %2092
          %v2094 = vlog2.pop %v2093
          %v2095 = vmul.f32 %v2094, 0.6931472
          %v2096 = vsub.f32 %v2088, %v2095
          %2097 = vst.msk [vmem:[%s750] sm:$0x1] %vm2084, %v2096
        $region108: #{tpu_custom_call.1} parent=99 // pred_fallthru
          _
        %s2098 = sand.u32 %s524, 1
        %s2099 = scalar_lea.sflag [#allocation4], %s2098
        %s2100 = sand.u32 %s524, 1
        %s2101 = scalar_lea.vmem [#allocation3], %s2100
        // Predicated region
        $region109: #{tpu_custom_call.1} parent=99 // pred_check
          %p2102 = pneg %p534
        $region110: #{tpu_custom_call.1} parent=99 // pred_check_branch
          %2104 = sbr.rel (%p2102) target = $region112
        $region111: #{tpu_custom_call.1} parent=99 // pred_region
          %2106 = vsyncadd %s2099, 0
          %s2107 = scalar_lea.hbm %s20, %s38
          %s2109 = sshll.u32 %s2101, 4
          %s2110 = int_to_ptr.vmem [resolvable:$true] %s2109
          %s2111 = sshll.u32 %s2107, 4
          %s2112 = int_to_ptr.hbm [resolvable:$true] %s2111
          %2114 = dma.vmem_to_hbm [thread:$0]  %s2110, 16, %s2112, %s2099
        $region112: #{tpu_custom_call.1} parent=99 // pred_fallthru
          _
      $region100: #{tpu_custom_call.1} parent=5 // pred_fallthru
        _
      %p2115 = scmp.le.s32.totalorder 2, %s29
      // Predicated region
      $region113: #{tpu_custom_call.1} parent=5 // pred_check
        %p2116 = pneg %p2115
      $region114: #{tpu_custom_call.1} parent=5 // pred_check_branch
        %2118 = sbr.rel (%p2116) target = $region116
      $region115: #{tpu_custom_call.1} parent=5 // pred_region
        %s2119 = ssub.s32 %s29, 2
        // Predicated region
        $region117: #{tpu_custom_call.1} parent=115 // pred_check
          %p2120 = pneg %p540
        $region118: #{tpu_custom_call.1} parent=115 // pred_check_branch
          %2122 = sbr.rel (%p2120) target = $region120
        $region119: #{tpu_custom_call.1} parent=115 // pred_region
          %s2123 = sand.u32 %s525, 1
          %s2124 = scalar_lea.sflag [#allocation4], %s2123
          %s2125 = sand.u32 %s525, 1
          %s2126 = scalar_lea.vmem [#allocation3], %s2125
          %2128 = dma.done %s2124, 16
        $region120: #{tpu_custom_call.1} parent=115 // pred_fallthru
          _
      $region116: #{tpu_custom_call.1} parent=5 // pred_fallthru
        _
    $region6: #{tpu_custom_call.1} parent=1 // loop_footer
      %s33 = sadd.s32 1, %s29
    $region7: #{tpu_custom_call.1} parent=1 // loop_footer_branch
      %28 = sbr.rel target = $region3
    $region8: #{tpu_custom_call.1} parent=1 // loop_exit
      _
    %2129 = vsyncpa [#allocation4], 1
    %s2130 = scalar_lea.sflag [#allocation4], 1
    %2131 = vsyncpa %s2130, 1

</llo_original>
